<compile_context>
chip_gen: v5e
topology: v5e:2x2
jax: 0.10.0
libtpu: 0.0.40
codegen_flags: <defaults>
</compile_context>

<pallas_src>
import functools

import jax
import jax.numpy as jnp
from jax.experimental import pallas as pl
from jax.experimental.pallas import tpu as pltpu


# (cout, kh, kw, stride) for the three conv layers of the PyTorch module.
CONV_CFG = [
    (32, 8, 8, 4),
    (64, 4, 4, 2),
    (64, 3, 3, 1),
]
CPAD = 128  # padded channel width carried through the conv stack (lane-dense)


# ----------------------------------------------------------------------------
# small helpers
# ----------------------------------------------------------------------------
def _round_up(x, m):
    return ((x + m - 1) // m) * m


def _pick_tile(dim, target, base):
    """dim is a positive multiple of `base`.  Return the largest tile that is a
    multiple of `base`, divides `dim`, and is <= target (or dim if dim<=target)."""
    if dim <= target:
        return dim
    t = (target // base) * base
    while t > base and dim % t != 0:
        t -= base
    return t


def _conv_out_dim(s, k, st):
    return (s - k) // st + 1


def conv_output_hw(h, w):
    for (_, kh, kw, st) in CONV_CFG:
        h, w = _conv_out_dim(h, kh, st), _conv_out_dim(w, kw, st)
    return h, w


# ----------------------------------------------------------------------------
# Pallas kernel 1: tiled  Y = relu?(X @ W + b)   with f32 accumulation
# ----------------------------------------------------------------------------
def _matmul_bias_act_kernel(x_ref, w_ref, b_ref, o_ref, acc_ref, *, relu):
    @pl.when(pl.program_id(2) == 0)
    def _init():
        acc_ref[...] = jnp.zeros_like(acc_ref)

    acc_ref[...] += jnp.dot(x_ref[...], w_ref[...],
                            preferred_element_type=jnp.float32)

    @pl.when(pl.program_id(2) == pl.num_programs(2) - 1)
    def _finish():
        y = acc_ref[...] + b_ref[...]          # bias is (1, tn) f32 -> broadcast
        if relu:
            y = jnp.maximum(y, 0.0)
        o_ref[...] = y.astype(o_ref.dtype)


def pallas_matmul_bias_act(x, w, b, *, relu, out_dtype,
                           tm_target=256, tk_target=512, tn_target=256):
    """x: (M, K) bf16, w: (K, N) bf16 (K, N multiples of 128), b: (1, N) f32."""
    M, K = x.shape
    Kw, N = w.shape
    assert K == Kw, (K, Kw)
    assert K % 128 == 0 and N % 128 == 0, (K, N)
    assert b.shape == (1, N), b.shape

    Mp = _round_up(M, 8)
    tm = _pick_tile(Mp, tm_target, 8)
    tk = _pick_tile(K, tk_target, 128)
    tn = _pick_tile(N, tn_target, 128)

    xp = x if Mp == M else jnp.pad(x, ((0, Mp - M), (0, 0)))
    grid = (Mp // tm, N // tn, K // tk)

    out = pl.pallas_call(
        functools.partial(_matmul_bias_act_kernel, relu=relu),
        out_shape=jax.ShapeDtypeStruct((Mp, N), out_dtype),
        grid_spec=pltpu.PrefetchScalarGridSpec(
            num_scalar_prefetch=0,
            grid=grid,
            in_specs=[
                pl.BlockSpec((tm, tk), lambda i, j, k: (i, k)),
                pl.BlockSpec((tk, tn), lambda i, j, k: (k, j)),
                pl.BlockSpec((1, tn), lambda i, j, k: (0, j)),
            ],
            out_specs=pl.BlockSpec((tm, tn), lambda i, j, k: (i, j)),
            scratch_shapes=[pltpu.VMEM((tm, tn), jnp.float32)],
        ),
        compiler_params=pltpu.CompilerParams(
            dimension_semantics=("parallel", "parallel", "arbitrary"),
            vmem_limit_bytes=32 * 1024 * 1024,
        ),
        cost_estimate=pl.CostEstimate(
            flops=2 * Mp * K * N,
            transcendentals=0,
            bytes_accessed=(Mp * K + K * N) * x.dtype.itemsize
                           + Mp * N * jnp.dtype(out_dtype).itemsize,
        ),
    )(xp, w, b)
    return out[:M] if Mp != M else out


# ----------------------------------------------------------------------------
# Pallas kernel 2: fused FC head   q = (relu(x @ W1 + b1)) @ W2 + b2
# (weights resident in VMEM; hidden activation never leaves the chip)
# ----------------------------------------------------------------------------
def _fc_head_kernel(x_ref, w1_ref, b1_ref, w2_ref, b2_ref, o_ref):
    h = jnp.dot(x_ref[...], w1_ref[...], preferred_element_type=jnp.float32)
    h = jnp.maximum(h + b1_ref[...], 0.0)
    y = jnp.dot(h.astype(w2_ref.dtype), w2_ref[...],
                preferred_element_type=jnp.float32)
    o_ref[...] = (y + b2_ref[...]).astype(o_ref.dtype)


def pallas_fc_head(x, w1, b1, w2, b2, n_out, *, tm_target=128):
    """x: (M, K1) bf16; w1: (K1, H) bf16; w2: (H, N2) bf16; b*: (1, .) f32."""
    M, K1 = x.shape
    K1w, Hd = w1.shape
    Hd2, N2 = w2.shape
    assert K1 == K1w and Hd == Hd2
    assert K1 % 128 == 0 and Hd % 128 == 0 and N2 % 128 == 0

    Mp = _round_up(M, 8)
    tm = _pick_tile(Mp, tm_target, 8)
    xp = x if Mp == M else jnp.pad(x, ((0, Mp - M), (0, 0)))

    out = pl.pallas_call(
        _fc_head_kernel,
        out_shape=jax.ShapeDtypeStruct((Mp, N2), jnp.float32),
        grid_spec=pltpu.PrefetchScalarGridSpec(
            num_scalar_prefetch=0,
            grid=(Mp // tm,),
            in_specs=[
                pl.BlockSpec((tm, K1), lambda i: (i, 0)),
                pl.BlockSpec((K1, Hd), lambda i: (0, 0)),
                pl.BlockSpec((1, Hd), lambda i: (0, 0)),
                pl.BlockSpec((Hd, N2), lambda i: (0, 0)),
                pl.BlockSpec((1, N2), lambda i: (0, 0)),
            ],
            out_specs=pl.BlockSpec((tm, N2), lambda i: (i, 0)),
        ),
        compiler_params=pltpu.CompilerParams(
            dimension_semantics=("parallel",),
            vmem_limit_bytes=32 * 1024 * 1024,
        ),
        cost_estimate=pl.CostEstimate(
            flops=2 * Mp * (K1 * Hd + Hd * N2),
            transcendentals=0,
            bytes_accessed=(Mp * K1 + K1 * Hd + Hd * N2) * 2 + Mp * N2 * 4,
        ),
    )(xp, w1, b1, w2, b2)
    return out[:M, :n_out]


# ----------------------------------------------------------------------------
# im2col glue (plain JAX, channels-last, no transposes): NHWC -> (B*OH*OW, KH*KW*C)
# ----------------------------------------------------------------------------
def _im2col_nhwc(x, kh, kw, stride):
    B, H, W, C = x.shape
    oh = _conv_out_dim(H, kh, stride)
    ow = _conv_out_dim(W, kw, stride)
    cols = []
    for i in range(kh):
        for j in range(kw):
            cols.append(x[:, i:i + stride * oh:stride, j:j + stride * ow:stride, :])
    patches = jnp.concatenate(cols, axis=-1)            # (B, oh, ow, kh*kw*C)
    return patches.reshape(B * oh * ow, kh * kw * C), oh, ow


def pallas_conv2d_nhwc(x, w_packed, b_packed, kh, kw, stride):
    """x: (B, H, W, Cpad) bf16; w_packed: (kh*kw*Cpad, Cout_pad) bf16."""
    B = x.shape[0]
    cols, oh, ow = _im2col_nhwc(x, kh, kw, stride)
    cout_p = w_packed.shape[1]
    y = pallas_matmul_bias_act(cols, w_packed, b_packed, relu=True,
                               out_dtype=jnp.bfloat16)
    return y.reshape(B, oh, ow, cout_p)


# ----------------------------------------------------------------------------
# Parameters: PyTorch-layout init + one-time packing (pad / permute / bf16)
# ----------------------------------------------------------------------------
def init_agent_nn_params(key, input_shape, n_actions):
    c_in, h, w = input_shape
    h3, w3 = conv_output_hw(h, w)
    conv_out_size = 64 * h3 * w3
    ks = jax.random.split(key, 10)
    s = 0.05
    params = {
        "conv1_w": jax.random.normal(ks[0], (32, c_in, 8, 8), jnp.float32) * s,
        "conv1_b": jax.random.normal(ks[1], (32,), jnp.float32) * s,
        "conv2_w": jax.random.normal(ks[2], (64, 32, 4, 4), jnp.float32) * s,
        "conv2_b": jax.random.normal(ks[3], (64,), jnp.float32) * s,
        "conv3_w": jax.random.normal(ks[4], (64, 64, 3, 3), jnp.float32) * s,
        "conv3_b": jax.random.normal(ks[5], (64,), jnp.float32) * s,
        "fc1_w": jax.random.normal(ks[6], (512, conv_out_size), jnp.float32) * s,
        "fc1_b": jax.random.normal(ks[7], (512,), jnp.float32) * s,
        "fc2_w": jax.random.normal(ks[8], (n_actions, 512), jnp.float32) * s,
        "fc2_b": jax.random.normal(ks[9], (n_actions,), jnp.float32) * s,
    }
    return params, conv_out_size


def _pack_conv(w, b, cin_pad, cout_pad):
    cout, cin, kh, kw = w.shape
    wt = jnp.transpose(w, (2, 3, 1, 0))                      # (kh, kw, cin, cout)
    wt = jnp.pad(wt, ((0, 0), (0, 0), (0, cin_pad - cin), (0, cout_pad - cout)))
    wt = wt.reshape(kh * kw * cin_pad, cout_pad).astype(jnp.bfloat16)
    bp = jnp.pad(b, (0, cout_pad - cout)).reshape(1, cout_pad).astype(jnp.float32)
    return wt, bp


def _pack_fc1(w, b, h3, w3, c_real, c_pad):
    # PyTorch fc1 weight (512, c_real*h3*w3), NCHW flatten order (c, oh, ow).
    # Permute rows to channels-last (oh, ow, c) + pad c -> c_pad, done ONCE here.
    out_f, in_f = w.shape
    assert in_f == c_real * h3 * w3
    wt = w.reshape(out_f, c_real, h3, w3)
    wt = jnp.transpose(wt, (2, 3, 1, 0))                     # (h3, w3, c, out)
    wt = jnp.pad(wt, ((0, 0), (0, 0), (0, c_pad - c_real), (0, 0)))
    wt = wt.reshape(h3 * w3 * c_pad, out_f).astype(jnp.bfloat16)
    bp = b.reshape(1, out_f).astype(jnp.float32)
    return wt, bp


def _pack_fc2(w, b):
    n_out, hid = w.shape
    n_pad = _round_up(n_out, 128)
    wt = jnp.pad(w.T, ((0, 0), (0, n_pad - n_out))).astype(jnp.bfloat16)
    bp = jnp.pad(b, (0, n_pad - n_out)).reshape(1, n_pad).astype(jnp.float32)
    return wt, bp


def pack_params(params, input_shape, n_actions):
    c_in, h, w = input_shape
    h3, w3 = conv_output_hw(h, w)

    # Pad conv1 input channels so K = kh*kw*cin is a multiple of 128.
    kh1, kw1 = CONV_CFG[0][1], CONV_CFG[0][2]
    cin1 = c_in
    while (kh1 * kw1 * cin1) % 128 != 0:
        cin1 += 1

    packed = {}
    packed["conv1_w"], packed["conv1_b"] = _pack_conv(params["conv1_w"], params["conv1_b"], cin1, CPAD)
    packed["conv2_w"], packed["conv2_b"] = _pack_conv(params["conv2_w"], params["conv2_b"], CPAD, CPAD)
    packed["conv3_w"], packed["conv3_b"] = _pack_conv(params["conv3_w"], params["conv3_b"], CPAD, CPAD)
    packed["fc1_w"], packed["fc1_b"] = _pack_fc1(params["fc1_w"], params["fc1_b"], h3, w3, 64, CPAD)
    packed["fc2_w"], packed["fc2_b"] = _pack_fc2(params["fc2_w"], params["fc2_b"])
    return packed


# ----------------------------------------------------------------------------
# Forward pass (semantics of AgentNN.forward; x is NCHW like the PyTorch module)
# ----------------------------------------------------------------------------
def agent_nn_forward(packed, x, n_actions):
    """x: (B, C, H, W) float32.  Returns Q-values (B, n_actions) float32."""
    B, C = x.shape[0], x.shape[1]
    # One-time layout change to channels-last + bf16; the whole conv stack stays NHWC.
    xh = jnp.transpose(x, (0, 2, 3, 1)).astype(jnp.bfloat16)
    kh1, kw1, st1 = CONV_CFG[0][1], CONV_CFG[0][2], CONV_CFG[0][3]
    cin1 = packed["conv1_w"].shape[0] // (kh1 * kw1)
    if cin1 > C:
        xh = jnp.pad(xh, ((0, 0), (0, 0), (0, 0), (0, cin1 - C)))

    y = pallas_conv2d_nhwc(xh, packed["conv1_w"], packed["conv1_b"], kh1, kw1, st1)
    y = pallas_conv2d_nhwc(y, packed["conv2_w"], packed["conv2_b"],
                           CONV_CFG[1][1], CONV_CFG[1][2], CONV_CFG[1][3])
    y = pallas_conv2d_nhwc(y, packed["conv3_w"], packed["conv3_b"],
                           CONV_CFG[2][1], CONV_CFG[2][2], CONV_CFG[2][3])

    y = y.reshape(B, -1)  # channels-last flatten; fc1 rows were permuted to match NCHW flatten
    q = pallas_fc_head(y, packed["fc1_w"], packed["fc1_b"],
                       packed["fc2_w"], packed["fc2_b"], n_actions)
    return q


# ----------------------------------------------------------------------------
if __name__ == "__main__":
    # Small shapes consistent with the module: 4 stacked frames, 36x36 spatial
    # (36 -> conv1 -> 8 -> conv2 -> 3 -> conv3 -> 1), 5 actions, batch=2.
    input_shape = (4, 36, 36)
    n_actions = 5
    batch = 2

    key = jax.random.PRNGKey(0)
    pkey, xkey = jax.random.split(key)
    params, conv_out_size = init_agent_nn_params(pkey, input_shape, n_actions)
    packed = pack_params(params, input_shape, n_actions)
    x = jax.random.normal(xkey, (batch,) + input_shape, jnp.float32)

    fwd = jax.jit(agent_nn_forward, static_argnames=("n_actions",))
    q = fwd(packed, x, n_actions=n_actions)
    q = jax.block_until_ready(q)
    assert q.shape == (batch, n_actions), q.shape
    assert q.dtype == jnp.float32, q.dtype
    print("KERNEL_OK")
</pallas_src>

<mosaic_0001>
module attributes {stable_mosaic.version = 11 : i64} {
  func.func @_matmul_bias_act_kernel(%arg0: i32, %arg1: i32, %arg2: i32, %arg3: memref<128x256xbf16, #tpu.memory_space<vmem>>, %arg4: memref<256x128xbf16, #tpu.memory_space<vmem>>, %arg5: memref<1x128xf32, #tpu.memory_space<vmem>>, %arg6: memref<128x128xbf16, #tpu.memory_space<vmem>>, %arg7: memref<128x128xf32, #tpu.memory_space<vmem>>) attributes {dimension_semantics = [#tpu.dimension_semantics<parallel>, #tpu.dimension_semantics<parallel>, #tpu.dimension_semantics<arbitrary>], iteration_bounds = array<i64: 1, 1, 1>, scalar_prefetch = 0 : i64, scratch_operands = 1 : i64, tpu.core_type = #tpu.core_type<tc>, window_params = [{transform_indices = @transform_0, window_bounds = array<i64: 128, 256>}, {transform_indices = @transform_1, window_bounds = array<i64: 256, 128>}, {transform_indices = @transform_2, window_bounds = array<i64: 1, 128>}, {transform_indices = @transform_3, window_bounds = array<i64: 128, 128>}]} {
    %c0_i32 = arith.constant 0 : i32
    %0 = arith.cmpi eq, %arg2, %c0_i32 : i32
    %1 = arith.extui %0 : i1 to i32
    %c0_i32_0 = arith.constant 0 : i32
    %2 = arith.cmpi ne, %1, %c0_i32_0 : i32
    scf.if %2 {
      %cst_10 = arith.constant 0.000000e+00 : f32
      %12 = vector.broadcast %cst_10 : f32 to vector<128x128xf32>
      %c0_11 = arith.constant 0 : index
      %c0_12 = arith.constant 0 : index
      %13 = vector.load %arg7[%c0_11, %c0_12] : memref<128x128xf32, #tpu.memory_space<vmem>>, vector<128x128xf32>
      tpu.vector_store %arg7[%c0_11, %c0_12], %12 {strides = array<i32>} : memref<128x128xf32, #tpu.memory_space<vmem>>, vector<128x128xf32>,
    } else {
    }
    %c0 = arith.constant 0 : index
    %c0_1 = arith.constant 0 : index
    %3 = vector.load %arg7[%c0, %c0_1] : memref<128x128xf32, #tpu.memory_space<vmem>>, vector<128x128xf32>
    %c0_2 = arith.constant 0 : index
    %c0_3 = arith.constant 0 : index
    %4 = vector.load %arg3[%c0_2, %c0_3] : memref<128x256xbf16, #tpu.memory_space<vmem>>, vector<128x256xbf16>
    %c0_4 = arith.constant 0 : index
    %c0_5 = arith.constant 0 : index
    %5 = vector.load %arg4[%c0_4, %c0_5] : memref<256x128xbf16, #tpu.memory_space<vmem>>, vector<256x128xbf16>
    %cst = arith.constant dense<0.000000e+00> : vector<128x128xf32>
    %6 = tpu.matmul %4, %5, %cst {dimension_numbers = #tpu.dot_dimension_numbers<[1], [0], [0], [1], [0, 0, 1, 1], [], []>} : vector<128x256xbf16>, vector<256x128xbf16>, vector<128x128xf32> -> vector<128x128xf32>
    %7 = arith.addf %3, %6 : vector<128x128xf32>
    %c0_6 = arith.constant 0 : index
    %c0_7 = arith.constant 0 : index
    %8 = vector.load %arg7[%c0_6, %c0_7] : memref<128x128xf32, #tpu.memory_space<vmem>>, vector<128x128xf32>
    tpu.vector_store %arg7[%c0_6, %c0_7], %7 {strides = array<i32>} : memref<128x128xf32, #tpu.memory_space<vmem>>, vector<128x128xf32>,
    %c0_i32_8 = arith.constant 0 : i32
    %9 = arith.cmpi eq, %arg2, %c0_i32_8 : i32
    %10 = arith.extui %9 : i1 to i32
    %c0_i32_9 = arith.constant 0 : i32
    %11 = arith.cmpi ne, %10, %c0_i32_9 : i32
    scf.if %11 {
      %c0_10 = arith.constant 0 : index
      %c0_11 = arith.constant 0 : index
      %12 = vector.load %arg7[%c0_10, %c0_11] : memref<128x128xf32, #tpu.memory_space<vmem>>, vector<128x128xf32>
      %c0_12 = arith.constant 0 : index
      %c0_13 = arith.constant 0 : index
      %13 = vector.load %arg5[%c0_12, %c0_13] : memref<1x128xf32, #tpu.memory_space<vmem>>, vector<1x128xf32>
      %14 = vector.broadcast %13 : vector<1x128xf32> to vector<128x128xf32>
      %15 = arith.addf %12, %14 : vector<128x128xf32>
      %cst_14 = arith.constant 0.000000e+00 : f32
      %16 = vector.broadcast %cst_14 : f32 to vector<128x128xf32>
      %17 = arith.maximumf %15, %16 : vector<128x128xf32>
      %18 = arith.truncf %17 : vector<128x128xf32> to vector<128x128xbf16>
      %c0_15 = arith.constant 0 : index
      %c0_16 = arith.constant 0 : index
      %19 = vector.load %arg6[%c0_15, %c0_16] : memref<128x128xbf16, #tpu.memory_space<vmem>>, vector<128x128xbf16>
      tpu.vector_store %arg6[%c0_15, %c0_16], %18 {strides = array<i32>} : memref<128x128xbf16, #tpu.memory_space<vmem>>, vector<128x128xbf16>,
    } else {
    }
    return
  }
  func.func @transform_0(%arg0: i32, %arg1: i32, %arg2: i32) -> (i32, i32) {
    %c0_i32 = arith.constant 0 : i32
    return %arg0, %arg2 : i32, i32
  }
  func.func @transform_1(%arg0: i32, %arg1: i32, %arg2: i32) -> (i32, i32) {
    %c0_i32 = arith.constant 0 : i32
    return %arg2, %arg1 : i32, i32
  }
  func.func @transform_2(%arg0: i32, %arg1: i32, %arg2: i32) -> (i32, i32) {
    %c0_i32 = arith.constant 0 : i32
    %c0_i32_0 = arith.constant 0 : i32
    return %c0_i32, %arg1 : i32, i32
  }
  func.func @transform_3(%arg0: i32, %arg1: i32, %arg2: i32) -> (i32, i32) {
    %c0_i32 = arith.constant 0 : i32
    return %arg0, %arg1 : i32, i32
  }
}

module attributes {stable_mosaic.version = 11 : i64} {
  func.func @_matmul_bias_act_kernel(%arg0: i32, %arg1: i32, %arg2: i32, %arg3: memref<24x512xbf16, #tpu.memory_space<vmem>>, %arg4: memref<512x128xbf16, #tpu.memory_space<vmem>>, %arg5: memref<1x128xf32, #tpu.memory_space<vmem>>, %arg6: memref<24x128xbf16, #tpu.memory_space<vmem>>, %arg7: memref<24x128xf32, #tpu.memory_space<vmem>>) attributes {dimension_semantics = [#tpu.dimension_semantics<parallel>, #tpu.dimension_semantics<parallel>, #tpu.dimension_semantics<arbitrary>], iteration_bounds = array<i64: 1, 1, 4>, scalar_prefetch = 0 : i64, scratch_operands = 1 : i64, tpu.core_type = #tpu.core_type<tc>, window_params = [{transform_indices = @transform_0, window_bounds = array<i64: 24, 512>}, {transform_indices = @transform_1, window_bounds = array<i64: 512, 128>}, {transform_indices = @transform_2, window_bounds = array<i64: 1, 128>}, {transform_indices = @transform_3, window_bounds = array<i64: 24, 128>}]} {
    %c0_i32 = arith.constant 0 : i32
    %0 = arith.cmpi eq, %arg2, %c0_i32 : i32
    %1 = arith.extui %0 : i1 to i32
    %c0_i32_0 = arith.constant 0 : i32
    %2 = arith.cmpi ne, %1, %c0_i32_0 : i32
    scf.if %2 {
      %cst_9 = arith.constant 0.000000e+00 : f32
      %12 = vector.broadcast %cst_9 : f32 to vector<24x128xf32>
      %c0_10 = arith.constant 0 : index
      %c0_11 = arith.constant 0 : index
      %13 = vector.load %arg7[%c0_10, %c0_11] : memref<24x128xf32, #tpu.memory_space<vmem>>, vector<24x128xf32>
      tpu.vector_store %arg7[%c0_10, %c0_11], %12 {strides = array<i32>} : memref<24x128xf32, #tpu.memory_space<vmem>>, vector<24x128xf32>,
    } else {
    }
    %c0 = arith.constant 0 : index
    %c0_1 = arith.constant 0 : index
    %3 = vector.load %arg7[%c0, %c0_1] : memref<24x128xf32, #tpu.memory_space<vmem>>, vector<24x128xf32>
    %c0_2 = arith.constant 0 : index
    %c0_3 = arith.constant 0 : index
    %4 = vector.load %arg3[%c0_2, %c0_3] : memref<24x512xbf16, #tpu.memory_space<vmem>>, vector<24x512xbf16>
    %c0_4 = arith.constant 0 : index
    %c0_5 = arith.constant 0 : index
    %5 = vector.load %arg4[%c0_4, %c0_5] : memref<512x128xbf16, #tpu.memory_space<vmem>>, vector<512x128xbf16>
    %cst = arith.constant dense<0.000000e+00> : vector<24x128xf32>
    %6 = tpu.matmul %4, %5, %cst {dimension_numbers = #tpu.dot_dimension_numbers<[1], [0], [0], [1], [0, 0, 1, 1], [], []>} : vector<24x512xbf16>, vector<512x128xbf16>, vector<24x128xf32> -> vector<24x128xf32>
    %7 = arith.addf %3, %6 : vector<24x128xf32>
    %c0_6 = arith.constant 0 : index
    %c0_7 = arith.constant 0 : index
    %8 = vector.load %arg7[%c0_6, %c0_7] : memref<24x128xf32, #tpu.memory_space<vmem>>, vector<24x128xf32>
    tpu.vector_store %arg7[%c0_6, %c0_7], %7 {strides = array<i32>} : memref<24x128xf32, #tpu.memory_space<vmem>>, vector<24x128xf32>,
    %c3_i32 = arith.constant 3 : i32
    %9 = arith.cmpi eq, %arg2, %c3_i32 : i32
    %10 = arith.extui %9 : i1 to i32
    %c0_i32_8 = arith.constant 0 : i32
    %11 = arith.cmpi ne, %10, %c0_i32_8 : i32
    scf.if %11 {
      %c0_9 = arith.constant 0 : index
      %c0_10 = arith.constant 0 : index
      %12 = vector.load %arg7[%c0_9, %c0_10] : memref<24x128xf32, #tpu.memory_space<vmem>>, vector<24x128xf32>
      %c0_11 = arith.constant 0 : index
      %c0_12 = arith.constant 0 : index
      %13 = vector.load %arg5[%c0_11, %c0_12] : memref<1x128xf32, #tpu.memory_space<vmem>>, vector<1x128xf32>
      %14 = vector.broadcast %13 : vector<1x128xf32> to vector<24x128xf32>
      %15 = arith.addf %12, %14 : vector<24x128xf32>
      %cst_13 = arith.constant 0.000000e+00 : f32
      %16 = vector.broadcast %cst_13 : f32 to vector<24x128xf32>
      %17 = arith.maximumf %15, %16 : vector<24x128xf32>
      %18 = arith.truncf %17 : vector<24x128xf32> to vector<24x128xbf16>
      %c0_14 = arith.constant 0 : index
      %c0_15 = arith.constant 0 : index
      %19 = vector.load %arg6[%c0_14, %c0_15] : memref<24x128xbf16, #tpu.memory_space<vmem>>, vector<24x128xbf16>
      tpu.vector_store %arg6[%c0_14, %c0_15], %18 {strides = array<i32>} : memref<24x128xbf16, #tpu.memory_space<vmem>>, vector<24x128xbf16>,
    } else {
    }
    return
  }
  func.func @transform_0(%arg0: i32, %arg1: i32, %arg2: i32) -> (i32, i32) {
    %c0_i32 = arith.constant 0 : i32
    return %arg0, %arg2 : i32, i32
  }
  func.func @transform_1(%arg0: i32, %arg1: i32, %arg2: i32) -> (i32, i32) {
    %c0_i32 = arith.constant 0 : i32
    return %arg2, %arg1 : i32, i32
  }
  func.func @transform_2(%arg0: i32, %arg1: i32, %arg2: i32) -> (i32, i32) {
    %c0_i32 = arith.constant 0 : i32
    %c0_i32_0 = arith.constant 0 : i32
    return %c0_i32, %arg1 : i32, i32
  }
  func.func @transform_3(%arg0: i32, %arg1: i32, %arg2: i32) -> (i32, i32) {
    %c0_i32 = arith.constant 0 : i32
    return %arg0, %arg1 : i32, i32
  }
}

module attributes {stable_mosaic.version = 11 : i64} {
  func.func @_fc_head_kernel(%arg0: i32, %arg1: memref<8x128xbf16, #tpu.memory_space<vmem>>, %arg2: memref<128x512xbf16, #tpu.memory_space<vmem>>, %arg3: memref<1x512xf32, #tpu.memory_space<vmem>>, %arg4: memref<512x128xbf16, #tpu.memory_space<vmem>>, %arg5: memref<1x128xf32, #tpu.memory_space<vmem>>, %arg6: memref<8x128xf32, #tpu.memory_space<vmem>>) attributes {dimension_semantics = [#tpu.dimension_semantics<parallel>], iteration_bounds = array<i64: 1>, scalar_prefetch = 0 : i64, scratch_operands = 0 : i64, tpu.core_type = #tpu.core_type<tc>, window_params = [{transform_indices = @transform_0, window_bounds = array<i64: 8, 128>}, {pipeline_mode = #tpu.pipeline_mode<synchronous>, transform_indices = @transform_1, window_bounds = array<i64: 128, 512>}, {pipeline_mode = #tpu.pipeline_mode<synchronous>, transform_indices = @transform_2, window_bounds = array<i64: 1, 512>}, {pipeline_mode = #tpu.pipeline_mode<synchronous>, transform_indices = @transform_3, window_bounds = array<i64: 512, 128>}, {pipeline_mode = #tpu.pipeline_mode<synchronous>, transform_indices = @transform_4, window_bounds = array<i64: 1, 128>}, {transform_indices = @transform_5, window_bounds = array<i64: 8, 128>}]} {
    %c0 = arith.constant 0 : index
    %c0_0 = arith.constant 0 : index
    %0 = vector.load %arg1[%c0, %c0_0] : memref<8x128xbf16, #tpu.memory_space<vmem>>, vector<8x128xbf16>
    %c0_1 = arith.constant 0 : index
    %c0_2 = arith.constant 0 : index
    %1 = vector.load %arg2[%c0_1, %c0_2] : memref<128x512xbf16, #tpu.memory_space<vmem>>, vector<128x512xbf16>
    %cst = arith.constant dense<0.000000e+00> : vector<8x512xf32>
    %2 = tpu.matmul %0, %1, %cst {dimension_numbers = #tpu.dot_dimension_numbers<[1], [0], [0], [1], [0, 0, 1, 1], [], []>} : vector<8x128xbf16>, vector<128x512xbf16>, vector<8x512xf32> -> vector<8x512xf32>
    %c0_3 = arith.constant 0 : index
    %c0_4 = arith.constant 0 : index
    %3 = vector.load %arg3[%c0_3, %c0_4] : memref<1x512xf32, #tpu.memory_space<vmem>>, vector<1x512xf32>
    %4 = vector.broadcast %3 : vector<1x512xf32> to vector<8x512xf32>
    %5 = arith.addf %2, %4 : vector<8x512xf32>
    %cst_5 = arith.constant 0.000000e+00 : f32
    %6 = vector.broadcast %cst_5 : f32 to vector<8x512xf32>
    %7 = arith.maximumf %5, %6 : vector<8x512xf32>
    %8 = arith.truncf %7 : vector<8x512xf32> to vector<8x512xbf16>
    %c0_6 = arith.constant 0 : index
    %c0_7 = arith.constant 0 : index
    %9 = vector.load %arg4[%c0_6, %c0_7] : memref<512x128xbf16, #tpu.memory_space<vmem>>, vector<512x128xbf16>
    %cst_8 = arith.constant dense<0.000000e+00> : vector<8x128xf32>
    %10 = tpu.matmul %8, %9, %cst_8 {dimension_numbers = #tpu.dot_dimension_numbers<[1], [0], [0], [1], [0, 0, 1, 1], [], []>} : vector<8x512xbf16>, vector<512x128xbf16>, vector<8x128xf32> -> vector<8x128xf32>
    %c0_9 = arith.constant 0 : index
    %c0_10 = arith.constant 0 : index
    %11 = vector.load %arg5[%c0_9, %c0_10] : memref<1x128xf32, #tpu.memory_space<vmem>>, vector<1x128xf32>
    %12 = vector.broadcast %11 : vector<1x128xf32> to vector<8x128xf32>
    %13 = arith.addf %10, %12 : vector<8x128xf32>
    %c0_11 = arith.constant 0 : index
    %c0_12 = arith.constant 0 : index
    %14 = vector.load %arg6[%c0_11, %c0_12] : memref<8x128xf32, #tpu.memory_space<vmem>>, vector<8x128xf32>
    tpu.vector_store %arg6[%c0_11, %c0_12], %13 {strides = array<i32>} : memref<8x128xf32, #tpu.memory_space<vmem>>, vector<8x128xf32>,
    return
  }
  func.func @transform_0(%arg0: i32) -> (i32, i32) {
    %c0_i32 = arith.constant 0 : i32
    %c0_i32_0 = arith.constant 0 : i32
    return %arg0, %c0_i32 : i32, i32
  }
  func.func @transform_1(%arg0: i32) -> (i32, i32) {
    %c0_i32 = arith.constant 0 : i32
    %c0_i32_0 = arith.constant 0 : i32
    %c0_i32_1 = arith.constant 0 : i32
    return %c0_i32, %c0_i32_0 : i32, i32
  }
  func.func @transform_2(%arg0: i32) -> (i32, i32) {
    %c0_i32 = arith.constant 0 : i32
    %c0_i32_0 = arith.constant 0 : i32
    %c0_i32_1 = arith.constant 0 : i32
    return %c0_i32, %c0_i32_0 : i32, i32
  }
  func.func @transform_3(%arg0: i32) -> (i32, i32) {
    %c0_i32 = arith.constant 0 : i32
    %c0_i32_0 = arith.constant 0 : i32
    %c0_i32_1 = arith.constant 0 : i32
    return %c0_i32, %c0_i32_0 : i32, i32
  }
  func.func @transform_4(%arg0: i32) -> (i32, i32) {
    %c0_i32 = arith.constant 0 : i32
    %c0_i32_0 = arith.constant 0 : i32
    %c0_i32_1 = arith.constant 0 : i32
    return %c0_i32, %c0_i32_0 : i32, i32
  }
  func.func @transform_5(%arg0: i32) -> (i32, i32) {
    %c0_i32 = arith.constant 0 : i32
    %c0_i32_0 = arith.constant 0 : i32
    return %arg0, %c0_i32 : i32, i32
  }
}

module attributes {stable_mosaic.version = 11 : i64} {
  func.func @_matmul_bias_act_kernel(%arg0: i32, %arg1: i32, %arg2: i32, %arg3: memref<8x384xbf16, #tpu.memory_space<vmem>>, %arg4: memref<384x128xbf16, #tpu.memory_space<vmem>>, %arg5: memref<1x128xf32, #tpu.memory_space<vmem>>, %arg6: memref<8x128xbf16, #tpu.memory_space<vmem>>, %arg7: memref<8x128xf32, #tpu.memory_space<vmem>>) attributes {dimension_semantics = [#tpu.dimension_semantics<parallel>, #tpu.dimension_semantics<parallel>, #tpu.dimension_semantics<arbitrary>], iteration_bounds = array<i64: 1, 1, 3>, scalar_prefetch = 0 : i64, scratch_operands = 1 : i64, tpu.core_type = #tpu.core_type<tc>, window_params = [{transform_indices = @transform_0, window_bounds = array<i64: 8, 384>}, {transform_indices = @transform_1, window_bounds = array<i64: 384, 128>}, {transform_indices = @transform_2, window_bounds = array<i64: 1, 128>}, {transform_indices = @transform_3, window_bounds = array<i64: 8, 128>}]} {
    %c0_i32 = arith.constant 0 : i32
    %0 = arith.cmpi eq, %arg2, %c0_i32 : i32
    %1 = arith.extui %0 : i1 to i32
    %c0_i32_0 = arith.constant 0 : i32
    %2 = arith.cmpi ne, %1, %c0_i32_0 : i32
    scf.if %2 {
      %cst_9 = arith.constant 0.000000e+00 : f32
      %12 = vector.broadcast %cst_9 : f32 to vector<8x128xf32>
      %c0_10 = arith.constant 0 : index
      %c0_11 = arith.constant 0 : index
      %13 = vector.load %arg7[%c0_10, %c0_11] : memref<8x128xf32, #tpu.memory_space<vmem>>, vector<8x128xf32>
      tpu.vector_store %arg7[%c0_10, %c0_11], %12 {strides = array<i32>} : memref<8x128xf32, #tpu.memory_space<vmem>>, vector<8x128xf32>,
    } else {
    }
    %c0 = arith.constant 0 : index
    %c0_1 = arith.constant 0 : index
    %3 = vector.load %arg7[%c0, %c0_1] : memref<8x128xf32, #tpu.memory_space<vmem>>, vector<8x128xf32>
    %c0_2 = arith.constant 0 : index
    %c0_3 = arith.constant 0 : index
    %4 = vector.load %arg3[%c0_2, %c0_3] : memref<8x384xbf16, #tpu.memory_space<vmem>>, vector<8x384xbf16>
    %c0_4 = arith.constant 0 : index
    %c0_5 = arith.constant 0 : index
    %5 = vector.load %arg4[%c0_4, %c0_5] : memref<384x128xbf16, #tpu.memory_space<vmem>>, vector<384x128xbf16>
    %cst = arith.constant dense<0.000000e+00> : vector<8x128xf32>
    %6 = tpu.matmul %4, %5, %cst {dimension_numbers = #tpu.dot_dimension_numbers<[1], [0], [0], [1], [0, 0, 1, 1], [], []>} : vector<8x384xbf16>, vector<384x128xbf16>, vector<8x128xf32> -> vector<8x128xf32>
    %7 = arith.addf %3, %6 : vector<8x128xf32>
    %c0_6 = arith.constant 0 : index
    %c0_7 = arith.constant 0 : index
    %8 = vector.load %arg7[%c0_6, %c0_7] : memref<8x128xf32, #tpu.memory_space<vmem>>, vector<8x128xf32>
    tpu.vector_store %arg7[%c0_6, %c0_7], %7 {strides = array<i32>} : memref<8x128xf32, #tpu.memory_space<vmem>>, vector<8x128xf32>,
    %c2_i32 = arith.constant 2 : i32
    %9 = arith.cmpi eq, %arg2, %c2_i32 : i32
    %10 = arith.extui %9 : i1 to i32
    %c0_i32_8 = arith.constant 0 : i32
    %11 = arith.cmpi ne, %10, %c0_i32_8 : i32
    scf.if %11 {
      %c0_9 = arith.constant 0 : index
      %c0_10 = arith.constant 0 : index
      %12 = vector.load %arg7[%c0_9, %c0_10] : memref<8x128xf32, #tpu.memory_space<vmem>>, vector<8x128xf32>
      %c0_11 = arith.constant 0 : index
      %c0_12 = arith.constant 0 : index
      %13 = vector.load %arg5[%c0_11, %c0_12] : memref<1x128xf32, #tpu.memory_space<vmem>>, vector<1x128xf32>
      %14 = vector.broadcast %13 : vector<1x128xf32> to vector<8x128xf32>
      %15 = arith.addf %12, %14 : vector<8x128xf32>
      %cst_13 = arith.constant 0.000000e+00 : f32
      %16 = vector.broadcast %cst_13 : f32 to vector<8x128xf32>
      %17 = arith.maximumf %15, %16 : vector<8x128xf32>
      %18 = arith.truncf %17 : vector<8x128xf32> to vector<8x128xbf16>
      %c0_14 = arith.constant 0 : index
      %c0_15 = arith.constant 0 : index
      %19 = vector.load %arg6[%c0_14, %c0_15] : memref<8x128xbf16, #tpu.memory_space<vmem>>, vector<8x128xbf16>
      tpu.vector_store %arg6[%c0_14, %c0_15], %18 {strides = array<i32>} : memref<8x128xbf16, #tpu.memory_space<vmem>>, vector<8x128xbf16>,
    } else {
    }
    return
  }
  func.func @transform_0(%arg0: i32, %arg1: i32, %arg2: i32) -> (i32, i32) {
    %c0_i32 = arith.constant 0 : i32
    return %arg0, %arg2 : i32, i32
  }
  func.func @transform_1(%arg0: i32, %arg1: i32, %arg2: i32) -> (i32, i32) {
    %c0_i32 = arith.constant 0 : i32
    return %arg2, %arg1 : i32, i32
  }
  func.func @transform_2(%arg0: i32, %arg1: i32, %arg2: i32) -> (i32, i32) {
    %c0_i32 = arith.constant 0 : i32
    %c0_i32_0 = arith.constant 0 : i32
    return %c0_i32, %arg1 : i32, i32
  }
  func.func @transform_3(%arg0: i32, %arg1: i32, %arg2: i32) -> (i32, i32) {
    %c0_i32 = arith.constant 0 : i32
    return %arg0, %arg1 : i32, i32
  }
}

</mosaic_0001>

<llo_original>
// kernel: agent_nn_forward.4
$region0: #{agent_nn_forward.4}
  #allocation0 [shape = 'u32[]', space=smem, size = 0x4, offset = 0x4, fixed_abs, tag = 'smem constant byte address 0x4 - core index']
  #allocation1 [shape = 'u32[72,128]{1,0:T(1,128)}', space=vmem, size = 0x9000, scoped, tag = 'internal scratch']
  #allocation2 [shape = 'f32[128,128]{1,0:T(8,128)}', space=vmem, size = 0x10000, scoped, tag = 'scratch operand']
  %s0 = inlined_call_operand.vmem [shape: bf16[128,256], index: 0, kind: input, shape index: {}]
  %s1 = inlined_call_operand.vmem [shape: bf16[256,128], index: 1, kind: input, shape index: {}]
  %s2 = inlined_call_operand.vmem [shape: f32[1,128], index: 2, kind: input, shape index: {}]
  %s3 = inlined_call_operand.vmem [shape: bf16[128,128], index: 3, kind: output, shape index: {}]
  %s4 = sld [smem:[#allocation0]]
  $region30: #{agent_nn_forward.4} parent=0
    _
  %s6 = ssub.s32 1, %s4
  %s7 = scalar_select 0, %s6, %s4
  // Predicated region
  $region2: #{agent_nn_forward.4} parent=0 // pred_check
    _
  $region3: #{agent_nn_forward.4} parent=0 // pred_check_branch
    %9 = sbr.rel (0) target = $region5
  $region4: #{agent_nn_forward.4} parent=0 // pred_region
    _
  $region5: #{agent_nn_forward.4} parent=0 // pred_fallthru
    _
  // Predicated region
  $region6: #{agent_nn_forward.4} parent=0 // pred_check
    _
  $region7: #{agent_nn_forward.4} parent=0 // pred_check_branch
    %11 = sbr.rel (0) target = $region9
  $region8: #{agent_nn_forward.4} parent=0 // pred_region
    _
  $region9: #{agent_nn_forward.4} parent=0 // pred_fallthru
    _
  // Predicated region
  $region10: #{agent_nn_forward.4} parent=0 // pred_check
    _
  $region11: #{agent_nn_forward.4} parent=0 // pred_check_branch
    %13 = sbr.rel (0) target = $region13
  $region12: #{agent_nn_forward.4} parent=0 // pred_region
    _
  $region13: #{agent_nn_forward.4} parent=0 // pred_fallthru
    _
  %p14 = scmp.eq.s32.totalorder 0, 0
  // Predicated region
  $region14: #{agent_nn_forward.4} parent=0 // pred_check
    %p15 = pneg %p14
  $region15: #{agent_nn_forward.4} parent=0 // pred_check_branch
    %17 = sbr.rel (%p15) target = $region17
  $region16: #{agent_nn_forward.4} parent=0 // pred_region
    %18 = vst [vmem:[#allocation2] sm:$0xff] 0.0
    %19 = vst [vmem:[#allocation2 + $0x8] sm:$0xff] 0.0
    %20 = vst [vmem:[#allocation2 + $0x10] sm:$0xff] 0.0
    %21 = vst [vmem:[#allocation2 + $0x18] sm:$0xff] 0.0
    %22 = vst [vmem:[#allocation2 + $0x20] sm:$0xff] 0.0
    %23 = vst [vmem:[#allocation2 + $0x28] sm:$0xff] 0.0
    %24 = vst [vmem:[#allocation2 + $0x30] sm:$0xff] 0.0
    %25 = vst [vmem:[#allocation2 + $0x38] sm:$0xff] 0.0
    %26 = vst [vmem:[#allocation2 + $0x40] sm:$0xff] 0.0
    %27 = vst [vmem:[#allocation2 + $0x48] sm:$0xff] 0.0
    %28 = vst [vmem:[#allocation2 + $0x50] sm:$0xff] 0.0
    %29 = vst [vmem:[#allocation2 + $0x58] sm:$0xff] 0.0
    %30 = vst [vmem:[#allocation2 + $0x60] sm:$0xff] 0.0
    %31 = vst [vmem:[#allocation2 + $0x68] sm:$0xff] 0.0
    %32 = vst [vmem:[#allocation2 + $0x70] sm:$0xff] 0.0
    %33 = vst [vmem:[#allocation2 + $0x78] sm:$0xff] 0.0
  $region17: #{agent_nn_forward.4} parent=0 // pred_fallthru
    _
  %v34 = vld [vmem:[#allocation2] sm:$0xff]
  %v35 = vld [vmem:[#allocation2 + $0x8] sm:$0xff]
  %v36 = vld [vmem:[#allocation2 + $0x10] sm:$0xff]
  %v37 = vld [vmem:[#allocation2 + $0x18] sm:$0xff]
  %v38 = vld [vmem:[#allocation2 + $0x20] sm:$0xff]
  %v39 = vld [vmem:[#allocation2 + $0x28] sm:$0xff]
  %v40 = vld [vmem:[#allocation2 + $0x30] sm:$0xff]
  %v41 = vld [vmem:[#allocation2 + $0x38] sm:$0xff]
  %v42 = vld [vmem:[#allocation2 + $0x40] sm:$0xff]
  %v43 = vld [vmem:[#allocation2 + $0x48] sm:$0xff]
  %v44 = vld [vmem:[#allocation2 + $0x50] sm:$0xff]
  %v45 = vld [vmem:[#allocation2 + $0x58] sm:$0xff]
  %v46 = vld [vmem:[#allocation2 + $0x60] sm:$0xff]
  %v47 = vld [vmem:[#allocation2 + $0x68] sm:$0xff]
  %v48 = vld [vmem:[#allocation2 + $0x70] sm:$0xff]
  %v49 = vld [vmem:[#allocation2 + $0x78] sm:$0xff]
  %v50 = vld [vmem:[%s0] sm:$0xff]
  %v51 = vld [vmem:[%s0 + $0x8] sm:$0xff]
  %v52 = vld [vmem:[%s0 + $0x10] sm:$0xff]
  %v53 = vld [vmem:[%s0 + $0x18] sm:$0xff]
  %v54 = vld [vmem:[%s0 + $0x20] sm:$0xff]
  %v55 = vld [vmem:[%s0 + $0x28] sm:$0xff]
  %v56 = vld [vmem:[%s0 + $0x30] sm:$0xff]
  %v57 = vld [vmem:[%s0 + $0x38] sm:$0xff]
  %v58 = vld [vmem:[%s0 + $0x40] sm:$0xff]
  %v59 = vld [vmem:[%s0 + $0x48] sm:$0xff]
  %v60 = vld [vmem:[%s0 + $0x50] sm:$0xff]
  %v61 = vld [vmem:[%s0 + $0x58] sm:$0xff]
  %v62 = vld [vmem:[%s0 + $0x60] sm:$0xff]
  %v63 = vld [vmem:[%s0 + $0x68] sm:$0xff]
  %v64 = vld [vmem:[%s0 + $0x70] sm:$0xff]
  %v65 = vld [vmem:[%s0 + $0x78] sm:$0xff]
  %v66 = vld [vmem:[%s1] sm:$0xf]
  %v67 = vld [vmem:[%s1 + $0x4] sm:$0xf]
  %v68 = vld [vmem:[%s1 + $0x8] sm:$0xf]
  %v69 = vld [vmem:[%s1 + $0xc] sm:$0xf]
  %v70 = vld [vmem:[%s1 + $0x10] sm:$0xf]
  %v71 = vld [vmem:[%s1 + $0x14] sm:$0xf]
  %v72 = vld [vmem:[%s1 + $0x18] sm:$0xf]
  %v73 = vld [vmem:[%s1 + $0x1c] sm:$0xf]
  %v74 = vld [vmem:[%s1 + $0x20] sm:$0xf]
  %v75 = vld [vmem:[%s1 + $0x24] sm:$0xf]
  %v76 = vld [vmem:[%s1 + $0x28] sm:$0xf]
  %v77 = vld [vmem:[%s1 + $0x2c] sm:$0xf]
  %v78 = vld [vmem:[%s1 + $0x30] sm:$0xf]
  %v79 = vld [vmem:[%s1 + $0x34] sm:$0xf]
  %v80 = vld [vmem:[%s1 + $0x38] sm:$0xf]
  %v81 = vld [vmem:[%s1 + $0x3c] sm:$0xf]
  %v82 = vld [vmem:[%s1 + $0x40] sm:$0xf]
  %v83 = vld [vmem:[%s1 + $0x44] sm:$0xf]
  %v84 = vld [vmem:[%s1 + $0x48] sm:$0xf]
  %v85 = vld [vmem:[%s1 + $0x4c] sm:$0xf]
  %v86 = vld [vmem:[%s1 + $0x50] sm:$0xf]
  %v87 = vld [vmem:[%s1 + $0x54] sm:$0xf]
  %v88 = vld [vmem:[%s1 + $0x58] sm:$0xf]
  %v89 = vld [vmem:[%s1 + $0x5c] sm:$0xf]
  %v90 = vld [vmem:[%s1 + $0x60] sm:$0xf]
  %v91 = vld [vmem:[%s1 + $0x64] sm:$0xf]
  %v92 = vld [vmem:[%s1 + $0x68] sm:$0xf]
  %v93 = vld [vmem:[%s1 + $0x6c] sm:$0xf]
  %v94 = vld [vmem:[%s1 + $0x70] sm:$0xf]
  %v95 = vld [vmem:[%s1 + $0x74] sm:$0xf]
  %v96 = vld [vmem:[%s1 + $0x78] sm:$0xf]
  %v97 = vld [vmem:[%s1 + $0x7c] sm:$0xf]
  %v114 = vunpack.c.l.b16 %v50
  %v115 = vunpack.c.h.b16 %v50
  %v116 = vunpack.c.l.b16 %v51
  %v117 = vunpack.c.h.b16 %v51
  %v118 = vunpack.c.l.b16 %v52
  %v119 = vunpack.c.h.b16 %v52
  %v120 = vunpack.c.l.b16 %v53
  %v121 = vunpack.c.h.b16 %v53
  %v122 = vunpack.c.l.b16 %v54
  %v123 = vunpack.c.h.b16 %v54
  %v124 = vunpack.c.l.b16 %v55
  %v125 = vunpack.c.h.b16 %v55
  %v126 = vunpack.c.l.b16 %v56
  %v127 = vunpack.c.h.b16 %v56
  %v128 = vunpack.c.l.b16 %v57
  %v129 = vunpack.c.h.b16 %v57
  %v130 = vunpack.c.l.b16 %v58
  %v131 = vunpack.c.h.b16 %v58
  %v132 = vunpack.c.l.b16 %v59
  %v133 = vunpack.c.h.b16 %v59
  %v134 = vunpack.c.l.b16 %v60
  %v135 = vunpack.c.h.b16 %v60
  %v136 = vunpack.c.l.b16 %v61
  %v137 = vunpack.c.h.b16 %v61
  %v138 = vunpack.c.l.b16 %v62
  %v139 = vunpack.c.h.b16 %v62
  %v140 = vunpack.c.l.b16 %v63
  %v141 = vunpack.c.h.b16 %v63
  %v142 = vunpack.c.l.b16 %v64
  %v143 = vunpack.c.h.b16 %v64
  %v144 = vunpack.c.l.b16 %v65
  %v145 = vunpack.c.h.b16 %v65
  %v146 = vpack.c.b16 %v116, %v114
  %v147 = vpack.c.b16 %v117, %v115
  %v148 = vpack.c.b16 %v120, %v118
  %v149 = vpack.c.b16 %v121, %v119
  %v150 = vpack.c.b16 %v124, %v122
  %v151 = vpack.c.b16 %v125, %v123
  %v152 = vpack.c.b16 %v128, %v126
  %v153 = vpack.c.b16 %v129, %v127
  %v154 = vpack.c.b16 %v132, %v130
  %v155 = vpack.c.b16 %v133, %v131
  %v156 = vpack.c.b16 %v136, %v134
  %v157 = vpack.c.b16 %v137, %v135
  %v158 = vpack.c.b16 %v140, %v138
  %v159 = vpack.c.b16 %v141, %v139
  %v160 = vpack.c.b16 %v144, %v142
  %v161 = vpack.c.b16 %v145, %v143
  %v210 = vunpack.c.l.b16 %v66
  %v211 = vunpack.c.l.b16 %v67
  %v212 = vunpack.c.l.b16 %v68
  %v213 = vunpack.c.l.b16 %v69
  %v214 = vunpack.c.l.b16 %v70
  %v215 = vunpack.c.l.b16 %v71
  %v216 = vunpack.c.l.b16 %v72
  %v217 = vunpack.c.l.b16 %v73
  %v218 = vunpack.c.l.b16 %v74
  %v219 = vunpack.c.l.b16 %v75
  %v220 = vunpack.c.l.b16 %v76
  %v221 = vunpack.c.l.b16 %v77
  %v222 = vunpack.c.l.b16 %v78
  %v223 = vunpack.c.l.b16 %v79
  %v224 = vunpack.c.l.b16 %v80
  %v225 = vunpack.c.l.b16 %v81
  %v226 = vunpack.c.l.b16 %v82
  %v227 = vunpack.c.l.b16 %v83
  %v228 = vunpack.c.l.b16 %v84
  %v229 = vunpack.c.l.b16 %v85
  %v230 = vunpack.c.l.b16 %v86
  %v231 = vunpack.c.l.b16 %v87
  %v232 = vunpack.c.l.b16 %v88
  %v233 = vunpack.c.l.b16 %v89
  %v234 = vunpack.c.l.b16 %v90
  %v235 = vunpack.c.l.b16 %v91
  %v236 = vunpack.c.l.b16 %v92
  %v237 = vunpack.c.l.b16 %v93
  %v238 = vunpack.c.l.b16 %v94
  %v239 = vunpack.c.l.b16 %v95
  %v240 = vunpack.c.l.b16 %v96
  %v241 = vunpack.c.l.b16 %v97
  %v242 = vpack.c.b16 %v211, %v210
  %v243 = vpack.c.b16 %v213, %v212
  %v244 = vpack.c.b16 %v215, %v214
  %v245 = vpack.c.b16 %v217, %v216
  %v246 = vpack.c.b16 %v219, %v218
  %v247 = vpack.c.b16 %v221, %v220
  %v248 = vpack.c.b16 %v223, %v222
  %v249 = vpack.c.b16 %v225, %v224
  %v250 = vpack.c.b16 %v227, %v226
  %v251 = vpack.c.b16 %v229, %v228
  %v252 = vpack.c.b16 %v231, %v230
  %v253 = vpack.c.b16 %v233, %v232
  %v254 = vpack.c.b16 %v235, %v234
  %v255 = vpack.c.b16 %v237, %v236
  %v256 = vpack.c.b16 %v239, %v238
  %v257 = vpack.c.b16 %v241, %v240
  %274 = vmatpush.bf16.msra.mxu0 %v249
  %275 = vmatpush.bf16.msra.mxu0 %v248
  %276 = vmatpush.bf16.msra.mxu0 %v247
  %277 = vmatpush.bf16.msra.mxu0 %v246
  %278 = vmatpush.bf16.msra.mxu0 %v245
  %279 = vmatpush.bf16.msra.mxu0 %v244
  %280 = vmatpush.bf16.msra.mxu0 %v243
  %281 = vmatpush.bf16.msra.mxu0 %v242
  %282 = vmatmul.bf16.gmra.mxu0 %v146
  %v283 = vpop.f32.mrf.mxu0
  %v284 = vadd.f32 0.0, %v283
  %v285 = vpop.f32.mrf.mxu0
  %v286 = vadd.f32 0.0, %v285
  %287 = vmatmul.bf16.gmra.mxu0 %v148
  %v288 = vpop.f32.mrf.mxu0
  %v289 = vadd.f32 0.0, %v288
  %v290 = vpop.f32.mrf.mxu0
  %v291 = vadd.f32 0.0, %v290
  %292 = vmatmul.bf16.gmra.mxu0 %v150
  %v293 = vpop.f32.mrf.mxu0
  %v294 = vadd.f32 0.0, %v293
  %v295 = vpop.f32.mrf.mxu0
  %v296 = vadd.f32 0.0, %v295
  %297 = vmatmul.bf16.gmra.mxu0 %v152
  %v298 = vpop.f32.mrf.mxu0
  %v299 = vadd.f32 0.0, %v298
  %v300 = vpop.f32.mrf.mxu0
  %v301 = vadd.f32 0.0, %v300
  %302 = vmatmul.bf16.gmra.mxu0 %v154
  %v303 = vpop.f32.mrf.mxu0
  %v304 = vadd.f32 0.0, %v303
  %v305 = vpop.f32.mrf.mxu0
  %v306 = vadd.f32 0.0, %v305
  %307 = vmatmul.bf16.gmra.mxu0 %v156
  %v308 = vpop.f32.mrf.mxu0
  %v309 = vadd.f32 0.0, %v308
  %v310 = vpop.f32.mrf.mxu0
  %v311 = vadd.f32 0.0, %v310
  %312 = vmatmul.bf16.gmra.mxu0 %v158
  %v313 = vpop.f32.mrf.mxu0
  %v314 = vadd.f32 0.0, %v313
  %v315 = vpop.f32.mrf.mxu0
  %v316 = vadd.f32 0.0, %v315
  %317 = vmatmul.bf16.gmra.mxu0 %v160
  %v318 = vpop.f32.mrf.mxu0
  %v319 = vadd.f32 0.0, %v318
  %v320 = vpop.f32.mrf.mxu0
  %v321 = vadd.f32 0.0, %v320
  %322 = vdwg.mxu0
  %323 = vmatpush.bf16.msra.mxu0 %v257
  %324 = vmatpush.bf16.msra.mxu0 %v256
  %325 = vmatpush.bf16.msra.mxu0 %v255
  %326 = vmatpush.bf16.msra.mxu0 %v254
  %327 = vmatpush.bf16.msra.mxu0 %v253
  %328 = vmatpush.bf16.msra.mxu0 %v252
  %329 = vmatpush.bf16.msra.mxu0 %v251
  %330 = vmatpush.bf16.msra.mxu0 %v250
  %331 = vmatmul.bf16.gmra.mxu0 %v147
  %v332 = vpop.f32.mrf.mxu0
  %v333 = vadd.f32 %v284, %v332
  %v334 = vpop.f32.mrf.mxu0
  %v335 = vadd.f32 %v286, %v334
  %336 = vmatmul.bf16.gmra.mxu0 %v149
  %v337 = vpop.f32.mrf.mxu0
  %v338 = vadd.f32 %v289, %v337
  %v339 = vpop.f32.mrf.mxu0
  %v340 = vadd.f32 %v291, %v339
  %341 = vmatmul.bf16.gmra.mxu0 %v151
  %v342 = vpop.f32.mrf.mxu0
  %v343 = vadd.f32 %v294, %v342
  %v344 = vpop.f32.mrf.mxu0
  %v345 = vadd.f32 %v296, %v344
  %346 = vmatmul.bf16.gmra.mxu0 %v153
  %v347 = vpop.f32.mrf.mxu0
  %v348 = vadd.f32 %v299, %v347
  %v349 = vpop.f32.mrf.mxu0
  %v350 = vadd.f32 %v301, %v349
  %351 = vmatmul.bf16.gmra.mxu0 %v155
  %v352 = vpop.f32.mrf.mxu0
  %v353 = vadd.f32 %v304, %v352
  %v354 = vpop.f32.mrf.mxu0
  %v355 = vadd.f32 %v306, %v354
  %356 = vmatmul.bf16.gmra.mxu0 %v157
  %v357 = vpop.f32.mrf.mxu0
  %v358 = vadd.f32 %v309, %v357
  %v359 = vpop.f32.mrf.mxu0
  %v360 = vadd.f32 %v311, %v359
  %361 = vmatmul.bf16.gmra.mxu0 %v159
  %v362 = vpop.f32.mrf.mxu0
  %v363 = vadd.f32 %v314, %v362
  %v364 = vpop.f32.mrf.mxu0
  %v365 = vadd.f32 %v316, %v364
  %366 = vmatmul.bf16.gmra.mxu0 %v161
  %v367 = vpop.f32.mrf.mxu0
  %v368 = vadd.f32 %v319, %v367
  %v369 = vpop.f32.mrf.mxu0
  %v370 = vadd.f32 %v321, %v369
  %371 = vdwg.mxu0
  %v372 = vadd.f32 %v34, %v333
  %v373 = vadd.f32 %v35, %v335
  %v374 = vadd.f32 %v36, %v338
  %v375 = vadd.f32 %v37, %v340
  %v376 = vadd.f32 %v38, %v343
  %v377 = vadd.f32 %v39, %v345
  %v378 = vadd.f32 %v40, %v348
  %v379 = vadd.f32 %v41, %v350
  %v380 = vadd.f32 %v42, %v353
  %v381 = vadd.f32 %v43, %v355
  %v382 = vadd.f32 %v44, %v358
  %v383 = vadd.f32 %v45, %v360
  %v384 = vadd.f32 %v46, %v363
  %v385 = vadd.f32 %v47, %v365
  %v386 = vadd.f32 %v48, %v368
  %v387 = vadd.f32 %v49, %v370
  %388 = vst [vmem:[#allocation2] sm:$0xff] %v372
  %389 = vst [vmem:[#allocation2 + $0x8] sm:$0xff] %v373
  %390 = vst [vmem:[#allocation2 + $0x10] sm:$0xff] %v374
  %391 = vst [vmem:[#allocation2 + $0x18] sm:$0xff] %v375
  %392 = vst [vmem:[#allocation2 + $0x20] sm:$0xff] %v376
  %393 = vst [vmem:[#allocation2 + $0x28] sm:$0xff] %v377
  %394 = vst [vmem:[#allocation2 + $0x30] sm:$0xff] %v378
  %395 = vst [vmem:[#allocation2 + $0x38] sm:$0xff] %v379
  %396 = vst [vmem:[#allocation2 + $0x40] sm:$0xff] %v380
  %397 = vst [vmem:[#allocation2 + $0x48] sm:$0xff] %v381
  %398 = vst [vmem:[#allocation2 + $0x50] sm:$0xff] %v382
  %399 = vst [vmem:[#allocation2 + $0x58] sm:$0xff] %v383
  %400 = vst [vmem:[#allocation2 + $0x60] sm:$0xff] %v384
  %401 = vst [vmem:[#allocation2 + $0x68] sm:$0xff] %v385
  %402 = vst [vmem:[#allocation2 + $0x70] sm:$0xff] %v386
  %403 = vst [vmem:[#allocation2 + $0x78] sm:$0xff] %v387
  // Predicated region
  $region18: #{agent_nn_forward.4} parent=0 // pred_check
    %p404 = pneg %p14
  $region19: #{agent_nn_forward.4} parent=0 // pred_check_branch
    %406 = sbr.rel (%p404) target = $region21
  $region20: #{agent_nn_forward.4} parent=0 // pred_region
    %v407 = vld [vmem:[#allocation2] sm:$0xff]
    %v408 = vld [vmem:[#allocation2 + $0x8] sm:$0xff]
    %v409 = vld [vmem:[#allocation2 + $0x10] sm:$0xff]
    %v410 = vld [vmem:[#allocation2 + $0x18] sm:$0xff]
    %v411 = vld [vmem:[#allocation2 + $0x20] sm:$0xff]
    %v412 = vld [vmem:[#allocation2 + $0x28] sm:$0xff]
    %v413 = vld [vmem:[#allocation2 + $0x30] sm:$0xff]
    %v414 = vld [vmem:[#allocation2 + $0x38] sm:$0xff]
    %v415 = vld [vmem:[#allocation2 + $0x40] sm:$0xff]
    %v416 = vld [vmem:[#allocation2 + $0x48] sm:$0xff]
    %v417 = vld [vmem:[#allocation2 + $0x50] sm:$0xff]
    %v418 = vld [vmem:[#allocation2 + $0x58] sm:$0xff]
    %v419 = vld [vmem:[#allocation2 + $0x60] sm:$0xff]
    %v420 = vld [vmem:[#allocation2 + $0x68] sm:$0xff]
    %v421 = vld [vmem:[#allocation2 + $0x70] sm:$0xff]
    %v422 = vld [vmem:[#allocation2 + $0x78] sm:$0xff]
    %v423 = vld [vmem:[%s2] sm:$0x1]
    %v425 = vperm.slane %v423, 0
    %v427 = vadd.f32 %v407, %v425
    %v428 = vadd.f32 %v408, %v425
    %v429 = vadd.f32 %v409, %v425
    %v430 = vadd.f32 %v410, %v425
    %v431 = vadd.f32 %v411, %v425
    %v432 = vadd.f32 %v412, %v425
    %v433 = vadd.f32 %v413, %v425
    %v434 = vadd.f32 %v414, %v425
    %v435 = vadd.f32 %v415, %v425
    %v436 = vadd.f32 %v416, %v425
    %v437 = vadd.f32 %v417, %v425
    %v438 = vadd.f32 %v418, %v425
    %v439 = vadd.f32 %v419, %v425
    %v440 = vadd.f32 %v420, %v425
    %v441 = vadd.f32 %v421, %v425
    %v442 = vadd.f32 %v422, %v425
    %v443 = vmax.f32 %v427, 0.0
    %v444 = vmax.f32 %v428, 0.0
    %v445 = vmax.f32 %v429, 0.0
    %v446 = vmax.f32 %v430, 0.0
    %v447 = vmax.f32 %v431, 0.0
    %v448 = vmax.f32 %v432, 0.0
    %v449 = vmax.f32 %v433, 0.0
    %v450 = vmax.f32 %v434, 0.0
    %v451 = vmax.f32 %v435, 0.0
    %v452 = vmax.f32 %v436, 0.0
    %v453 = vmax.f32 %v437, 0.0
    %v454 = vmax.f32 %v438, 0.0
    %v455 = vmax.f32 %v439, 0.0
    %v456 = vmax.f32 %v440, 0.0
    %v457 = vmax.f32 %v441, 0.0
    %v458 = vmax.f32 %v442, 0.0
    %v459 = vpack.c.bf16 %v443, %v443
    %v460 = vpack.c.bf16 %v444, %v444
    %v461 = vpack.c.bf16 %v445, %v445
    %v462 = vpack.c.bf16 %v446, %v446
    %v463 = vpack.c.bf16 %v447, %v447
    %v464 = vpack.c.bf16 %v448, %v448
    %v465 = vpack.c.bf16 %v449, %v449
    %v466 = vpack.c.bf16 %v450, %v450
    %v467 = vpack.c.bf16 %v451, %v451
    %v468 = vpack.c.bf16 %v452, %v452
    %v469 = vpack.c.bf16 %v453, %v453
    %v470 = vpack.c.bf16 %v454, %v454
    %v471 = vpack.c.bf16 %v455, %v455
    %v472 = vpack.c.bf16 %v456, %v456
    %v473 = vpack.c.bf16 %v457, %v457
    %v474 = vpack.c.bf16 %v458, %v458
    %475 = vst [vmem:[%s3] sm:$0xf] %v459
    %476 = vst [vmem:[%s3 + $0x4] sm:$0xf] %v460
    %477 = vst [vmem:[%s3 + $0x8] sm:$0xf] %v461
    %478 = vst [vmem:[%s3 + $0xc] sm:$0xf] %v462
    %479 = vst [vmem:[%s3 + $0x10] sm:$0xf] %v463
    %480 = vst [vmem:[%s3 + $0x14] sm:$0xf] %v464
    %481 = vst [vmem:[%s3 + $0x18] sm:$0xf] %v465
    %482 = vst [vmem:[%s3 + $0x1c] sm:$0xf] %v466
    %483 = vst [vmem:[%s3 + $0x20] sm:$0xf] %v467
    %484 = vst [vmem:[%s3 + $0x24] sm:$0xf] %v468
    %485 = vst [vmem:[%s3 + $0x28] sm:$0xf] %v469
    %486 = vst [vmem:[%s3 + $0x2c] sm:$0xf] %v470
    %487 = vst [vmem:[%s3 + $0x30] sm:$0xf] %v471
    %488 = vst [vmem:[%s3 + $0x34] sm:$0xf] %v472
    %489 = vst [vmem:[%s3 + $0x38] sm:$0xf] %v473
    %490 = vst [vmem:[%s3 + $0x3c] sm:$0xf] %v474
  $region21: #{agent_nn_forward.4} parent=0 // pred_fallthru
    _
  // Predicated region
  $region22: #{agent_nn_forward.4} parent=0 // pred_check
    _
  $region23: #{agent_nn_forward.4} parent=0 // pred_check_branch
    %492 = sbr.rel (0) target = $region25
  $region24: #{agent_nn_forward.4} parent=0 // pred_region
    _
  $region25: #{agent_nn_forward.4} parent=0 // pred_fallthru
    _
  // Predicated region
  $region26: #{agent_nn_forward.4} parent=0 // pred_check
    _
  $region27: #{agent_nn_forward.4} parent=0 // pred_check_branch
    %494 = sbr.rel (0) target = $region29
  $region28: #{agent_nn_forward.4} parent=0 // pred_region
    _
  $region29: #{agent_nn_forward.4} parent=0 // pred_fallthru
    _

// kernel: agent_nn_forward.5
$region0: #{agent_nn_forward.5}
  #allocation0 [shape = 'u32[]', space=smem, size = 0x4, offset = 0x4, fixed_abs, tag = 'smem constant byte address 0x4 - core index']
  #allocation1 [shape = 'u32[72,128]{1,0:T(1,128)}', space=vmem, size = 0x9000, scoped, tag = 'internal scratch']
  #allocation2 [shape = 'f32[24,128]{1,0:T(8,128)}', space=vmem, size = 0x3000, scoped, tag = 'scratch operand']
  %s0 = inlined_call_operand.vmem [shape: bf16[24,2048], index: 0, kind: input, shape index: {}]
  %s1 = inlined_call_operand.vmem [shape: bf16[2048,128], index: 1, kind: input, shape index: {}]
  %s2 = inlined_call_operand.vmem [shape: f32[1,128], index: 2, kind: input, shape index: {}]
  %s3 = inlined_call_operand.vmem [shape: bf16[24,128], index: 3, kind: output, shape index: {}]
  %s4 = sld [smem:[#allocation0]]
  $region76: #{agent_nn_forward.5} parent=0
    _
  %s6 = ssub.s32 1, %s4
  %s7 = scalar_select 0, %s6, %s4
  $region1: #{agent_nn_forward.5} parent=0
    #allocation3 [shape = 'u8[49152]{0}', space=vmem, size = 0xc000, scoped, tag = 'input window, operand 0']
    loop: start=0, step=1, limit=6
    $region2: #{agent_nn_forward.5} parent=1 // loop_pre_header
      _
    $region3: #{agent_nn_forward.5} parent=1 // loop_header
      %s9 = sphi 0, %s13
      %p10 = scmp.ge.s32.totalorder %s9, 6
      %s16 = sphi 0, %s35
      %s17 = sphi 0, %s31
      %s18 = sphi 0, %s27
      %s19 = sphi 0, %s16
      %s20 = sphi 0, %s17
      %s21 = sphi 0, %s18
      %s22 = sphi 0, %s19
      %s23 = sphi 0, %s20
      %s24 = sphi 0, %s21
      %s40 = sphi 0, %s42
      %s43 = sphi 0, %s40
      %s44 = sphi 0, %s43
      %s60 = sphi 0, %s44
      %s68 = sphi 0, %s70
      %s71 = sphi 0, %s68
      %s72 = sphi 0, %s71
      %s88 = sphi 0, %s72
      %s94 = sphi 0, %s96
      %s97 = sphi 0, %s94
      %s98 = sphi 0, %s97
      %s114 = sphi 0, %s98
      %s122 = sphi 0, %s124
      %s125 = sphi 0, %s122
      %s126 = sphi 0, %s125
      %s142 = sphi 0, %s126
    $region4: #{agent_nn_forward.5} parent=1 // loop_header_branch
      %12 = sbr.rel (%p10) target = $region8
    $region5: #{agent_nn_forward.5} parent=1 // loop_body
      %s14 = ssub.s32 %s9, 1
      %s15 = ssub.s32 %s9, 2
      %s25 = sadd.s32 1, %s18
      %p26 = scmp.ge.s32.totalorder %s25, 4
      %s27 = scalar_select %p26, 0, %s25
      %s28 = sadd.s32 1, %s17
      %s29 = scalar_select %p26, %s28, %s17
      %p30 = scmp.ge.s32.totalorder %s29, 1
      %s31 = scalar_select %p30, 0, %s29
      %s32 = sadd.s32 1, %s16
      %s33 = scalar_select %p30, %s32, %s16
      %p34 = scmp.ge.s32.totalorder %s33, 1
      %s35 = scalar_select %p34, 0, %s33
      %s36 = ssub.s32 %s16, %s35
      %s37 = ssub.s32 %s18, %s27
      %s38 = sor.u32 %s36, %s37
      %p39 = scmp.eq.s32.totalorder %s38, 0
      %s41 = sadd.s32 %s40, 1
      %s42 = scalar_select %p39, %s40, %s41
      %p45 = pneg %p39
      %p46 = scmp.eq.s32.totalorder %s9, 3
      %p47 = por %p45, %p46
      %p48 = scmp.ne.s32.totalorder %s40, %s43
      %p49 = scmp.eq.s32.totalorder %s9, 0
      %p50 = por %p48, %p49
      %p51 = scmp.ne.s32.totalorder %s40, %s43
      %p52 = scmp.eq.s32.totalorder %s14, 3
      %p53 = por %p51, %p52
      %p54 = scmp.ne.s32.totalorder %s43, %s44
      %p55 = scmp.eq.s32.totalorder %s14, 0
      %p56 = por %p54, %p55
      %p57 = scmp.ne.s32.totalorder %s43, %s44
      %p58 = scmp.eq.s32.totalorder %s15, 3
      %p59 = por %p57, %p58
      %p61 = scmp.ne.s32.totalorder %s44, %s60
      %p62 = scmp.eq.s32.totalorder %s15, 0
      %p63 = por %p61, %p62
      %s64 = ssub.s32 %s18, %s27
      %s65 = ssub.s32 %s17, %s31
      %s66 = sor.u32 %s64, %s65
      %p67 = scmp.eq.s32.totalorder %s66, 0
      %s69 = sadd.s32 %s68, 1
      %s70 = scalar_select %p67, %s68, %s69
      %p73 = pneg %p67
      %p74 = scmp.eq.s32.totalorder %s9, 3
      %p75 = por %p73, %p74
      %p76 = scmp.ne.s32.totalorder %s68, %s71
      %p77 = scmp.eq.s32.totalorder %s9, 0
      %p78 = por %p76, %p77
      %p79 = scmp.ne.s32.totalorder %s68, %s71
      %p80 = scmp.eq.s32.totalorder %s14, 3
      %p81 = por %p79, %p80
      %p82 = scmp.ne.s32.totalorder %s71, %s72
      %p83 = scmp.eq.s32.totalorder %s14, 0
      %p84 = por %p82, %p83
      %p85 = scmp.ne.s32.totalorder %s71, %s72
      %p86 = scmp.eq.s32.totalorder %s15, 3
      %p87 = por %p85, %p86
      %p89 = scmp.ne.s32.totalorder %s72, %s88
      %p90 = scmp.eq.s32.totalorder %s15, 0
      %p91 = por %p89, %p90
      %s92 = ssub.s32 %s17, %s31
      %p93 = scmp.eq.s32.totalorder %s92, 0
      %s95 = sadd.s32 %s94, 1
      %s96 = scalar_select %p93, %s94, %s95
      %p99 = pneg %p93
      %p100 = scmp.eq.s32.totalorder %s9, 3
      %p101 = por %p99, %p100
      %p102 = scmp.ne.s32.totalorder %s94, %s97
      %p103 = scmp.eq.s32.totalorder %s9, 0
      %p104 = por %p102, %p103
      %p105 = scmp.ne.s32.totalorder %s94, %s97
      %p106 = scmp.eq.s32.totalorder %s14, 3
      %p107 = por %p105, %p106
      %p108 = scmp.ne.s32.totalorder %s97, %s98
      %p109 = scmp.eq.s32.totalorder %s14, 0
      %p110 = por %p108, %p109
      %p111 = scmp.ne.s32.totalorder %s97, %s98
      %p112 = scmp.eq.s32.totalorder %s15, 3
      %p113 = por %p111, %p112
      %p115 = scmp.ne.s32.totalorder %s98, %s114
      %p116 = scmp.eq.s32.totalorder %s15, 0
      %p117 = por %p115, %p116
      %s118 = ssub.s32 %s16, %s35
      %s119 = ssub.s32 %s17, %s31
      %s120 = sor.u32 %s118, %s119
      %p121 = scmp.eq.s32.totalorder %s120, 0
      %s123 = sadd.s32 %s122, 1
      %s124 = scalar_select %p121, %s122, %s123
      %p127 = pneg %p121
      %p128 = scmp.eq.s32.totalorder %s9, 3
      %p129 = por %p127, %p128
      %p130 = scmp.ne.s32.totalorder %s122, %s125
      %p131 = scmp.eq.s32.totalorder %s9, 0
      %p132 = por %p130, %p131
      %p133 = scmp.ne.s32.totalorder %s122, %s125
      %p134 = scmp.eq.s32.totalorder %s14, 3
      %p135 = por %p133, %p134
      %p136 = scmp.ne.s32.totalorder %s125, %s126
      %p137 = scmp.eq.s32.totalorder %s14, 0
      %p138 = por %p136, %p137
      %p139 = scmp.ne.s32.totalorder %s125, %s126
      %p140 = scmp.eq.s32.totalorder %s15, 3
      %p141 = por %p139, %p140
      %p143 = scmp.ne.s32.totalorder %s126, %s142
      %p144 = scmp.eq.s32.totalorder %s15, 0
      %p145 = por %p143, %p144
      %p146 = scmp.le.s32.totalorder 1, %s9
      %p147 = scmp.lt.s32.totalorder %s9, 5
      %p148 = pnand %p146, %p147
      %p149 = pneg %p148
      // Predicated region
      $region9: #{agent_nn_forward.5} parent=5 // pred_check
        _
      $region10: #{agent_nn_forward.5} parent=5 // pred_check_branch
        %151 = sbr.rel (%p148) target = $region12
      $region11: #{agent_nn_forward.5} parent=5 // pred_region
        %s152 = ssub.s32 %s9, 1
        // Predicated region
        $region13: #{agent_nn_forward.5} parent=11 // pred_check
          %p153 = pneg %p110
        $region14: #{agent_nn_forward.5} parent=11 // pred_check_branch
          %155 = sbr.rel (%p153) target = $region16
        $region15: #{agent_nn_forward.5} parent=11 // pred_region
          %p156 = scmp.lt.s32.totalorder %s20, 0
          %s157 = scalar_select %p156, %s20, 0
          %s158 = scalar_lea.vmem %s2, %s157
        $region16: #{agent_nn_forward.5} parent=11 // pred_fallthru
          _
      $region12: #{agent_nn_forward.5} parent=5 // pred_fallthru
        _
      %p159 = scmp.lt.s32.totalorder %s9, 4
      // Predicated region
      $region17: #{agent_nn_forward.5} parent=5 // pred_check
        %p160 = pneg %p159
      $region18: #{agent_nn_forward.5} parent=5 // pred_check_branch
        %162 = sbr.rel (%p160) target = $region20
      $region19: #{agent_nn_forward.5} parent=5 // pred_region
        // Predicated region
        $region21: #{agent_nn_forward.5} parent=19 // pred_check
          %p163 = pneg %p50
        $region22: #{agent_nn_forward.5} parent=19 // pred_check_branch
          %165 = sbr.rel (%p163) target = $region24
        $region23: #{agent_nn_forward.5} parent=19 // pred_region
          %s166 = sand.u32 %s40, 1
          %s167 = sand.u32 %s40, 1
          %s168 = smul.addr %s167, 48
          %s169 = scalar_lea.vmem [#allocation3], %s168
          %s170 = smul.u32 3, %s16
          %s171 = smul.u32 4, %s18
          %s172 = smul.addr %s170, 16
          %s173 = sadd.s32 %s171, %s172
          %s174 = smul.addr %s173, 4
          %s175 = scalar_lea.vmem %s0, %s174
          // Predicated region
          $region25: #{agent_nn_forward.5} parent=23 // pred_check
            _
          $region26: #{agent_nn_forward.5} parent=23 // pred_check_branch
            %177 = sbr.rel (0) target = $region28
          $region27: #{agent_nn_forward.5} parent=23 // pred_region
            // Predicated region
            $region29: #{agent_nn_forward.5} parent=27 // pred_check
              _
            $region30: #{agent_nn_forward.5} parent=27 // pred_check_branch
              %179 = sbr.rel (0) target = $region32
            $region31: #{agent_nn_forward.5} parent=27 // pred_region
              loop: start=0, step=1, limit=1
              $region33: #{agent_nn_forward.5} parent=31 // loop_pre_header
                _
              $region34: #{agent_nn_forward.5} parent=31 // loop_header
                %s181 = sphi 0, %s185
                %p182 = scmp.ge.s32.totalorder %s181, 1
                %s186 = sphi %s175, %s175
                %s187 = sphi %s169, %s169
              $region35: #{agent_nn_forward.5} parent=31 // loop_header_branch
                %184 = sbr.rel (%p182) target = $region39
              $region36: #{agent_nn_forward.5} parent=31 // loop_body
                %v188 = vld [vmem:[%s186] sm:$0xff]
                %189 = vst [vmem:[%s187] sm:$0xff] %v188
                %v190 = vld [vmem:[%s186 + $0x8] sm:$0xff]
                %191 = vst [vmem:[%s187 + $0x8] sm:$0xff] %v190
                %v192 = vld [vmem:[%s186 + $0x40] sm:$0xff]
                %193 = vst [vmem:[%s187 + $0x10] sm:$0xff] %v192
                %v194 = vld [vmem:[%s186 + $0x48] sm:$0xff]
                %195 = vst [vmem:[%s187 + $0x18] sm:$0xff] %v194
                %v196 = vld [vmem:[%s186 + $0x80] sm:$0xff]
                %197 = vst [vmem:[%s187 + $0x20] sm:$0xff] %v196
                %v198 = vld [vmem:[%s186 + $0x88] sm:$0xff]
                %199 = vst [vmem:[%s187 + $0x28] sm:$0xff] %v198
              $region37: #{agent_nn_forward.5} parent=31 // loop_footer
                %s185 = sadd.s32 1, %s181
              $region38: #{agent_nn_forward.5} parent=31 // loop_footer_branch
                %180 = sbr.rel target = $region34
              $region39: #{agent_nn_forward.5} parent=31 // loop_exit
                _
            $region32: #{agent_nn_forward.5} parent=27 // pred_fallthru
              _
            // Predicated region
            $region40: #{agent_nn_forward.5} parent=27 // pred_check
              _
            $region41: #{agent_nn_forward.5} parent=27 // pred_check_branch
              %201 = sbr.rel target = $region43
            $region42: #{agent_nn_forward.5} parent=27 // pred_region
              _
            $region43: #{agent_nn_forward.5} parent=27 // pred_fallthru
              _
          $region28: #{agent_nn_forward.5} parent=23 // pred_fallthru
            _
          %202 = vnop
        $region24: #{agent_nn_forward.5} parent=19 // pred_fallthru
          _
        // Predicated region
        $region44: #{agent_nn_forward.5} parent=19 // pred_check
          %p203 = pneg %p78
        $region45: #{agent_nn_forward.5} parent=19 // pred_check_branch
          %205 = sbr.rel (%p203) target = $region47
        $region46: #{agent_nn_forward.5} parent=19 // pred_region
          %s206 = smul.u32 64, %s18
          %p207 = scmp.lt.s32.totalorder %s206, 255
          %s208 = scalar_select %p207, %s206, 255
          %p209 = scmp.lt.s32.totalorder %s17, 0
          %s210 = scalar_select %p209, %s17, 0
          %s211 = sadd.s32 %s210, %s208
          %s212 = smul.addr %s211, 4
          %s213 = scalar_lea.vmem %s1, %s212
          %s214 = smul.u32 64, %s18
        $region47: #{agent_nn_forward.5} parent=19 // pred_fallthru
          _
      $region20: #{agent_nn_forward.5} parent=5 // pred_fallthru
        _
      %p215 = scmp.le.s32.totalorder 1, %s9
      %p216 = scmp.lt.s32.totalorder %s9, 5
      %p217 = pnand %p215, %p216
      %p218 = pneg %p217
      // Predicated region
      $region48: #{agent_nn_forward.5} parent=5 // pred_check
        _
      $region49: #{agent_nn_forward.5} parent=5 // pred_check_branch
        %220 = sbr.rel (%p217) target = $region51
      $region50: #{agent_nn_forward.5} parent=5 // pred_region
        %s221 = ssub.s32 %s9, 1
        %s222 = sand.u32 %s43, 1
        %s223 = sand.u32 %s43, 1
        %s224 = smul.addr %s223, 48
        %s225 = scalar_lea.vmem [#allocation3], %s224
        // Predicated region
        $region52: #{agent_nn_forward.5} parent=50 // pred_check
          %p226 = pneg %p56
        $region53: #{agent_nn_forward.5} parent=50 // pred_check_branch
          %228 = sbr.rel (%p226) target = $region55
        $region54: #{agent_nn_forward.5} parent=50 // pred_region
          _
        $region55: #{agent_nn_forward.5} parent=50 // pred_fallthru
          _
        %s229 = sand.u32 %s43, 1
        %s230 = sand.u32 %s43, 1
        %s231 = smul.addr %s230, 48
        %s232 = scalar_lea.vmem [#allocation3], %s231
        %p233 = pneg %p56
        %p234 = pneg %p53
        %s235 = smul.u32 64, %s21
        %p236 = scmp.lt.s32.totalorder %s235, 255
        %s237 = scalar_select %p236, %s235, 255
        %p238 = scmp.lt.s32.totalorder %s20, 0
        %s239 = scalar_select %p238, %s20, 0
        %s240 = sadd.s32 %s239, %s237
        %s241 = smul.addr %s240, 4
        %s242 = scalar_lea.vmem %s1, %s241
        %p243 = pneg %p84
        %p244 = pneg %p81
        %p245 = scmp.lt.s32.totalorder %s20, 0
        %s246 = scalar_select %p245, %s20, 0
        %s247 = scalar_lea.vmem %s2, %s246
        %p248 = pneg %p110
        %p249 = pneg %p107
        %p250 = pneg %p138
        %p251 = pneg %p135
        %s252 = smul.u32 3, %s19
        %p253 = scmp.lt.s32.totalorder %s252, 2
        %s254 = scalar_select %p253, %s252, 2
        %p255 = scmp.lt.s32.totalorder %s20, 0
        %s256 = scalar_select %p255, %s20, 0
        %s257 = sadd.s32 %s256, %s254
        %s258 = smul.addr %s257, 4
        %s259 = scalar_lea.vmem %s3, %s258
        %s260 = smul.u32 3, %s19
        %s261 = smul.u32 4, %s21
        %s262 = smul.u32 64, %s21
        %p263 = scmp.lt.s32.totalorder %s262, 255
        %s264 = scalar_select %p263, %s262, 255
        %p265 = scmp.lt.s32.totalorder %s20, 0
        %s266 = scalar_select %p265, %s20, 0
        %s267 = sadd.s32 %s266, %s264
        %s268 = smul.addr %s267, 4
        %s269 = scalar_lea.vmem %s1, %s268
        %s270 = smul.u32 64, %s21
        %p271 = scmp.lt.s32.totalorder %s20, 0
        %s272 = scalar_select %p271, %s20, 0
        %s273 = scalar_lea.vmem %s2, %s272
        %s274 = smul.u32 3, %s19
        %p275 = scmp.lt.s32.totalorder %s274, 2
        %s276 = scalar_select %p275, %s274, 2
        %p277 = scmp.lt.s32.totalorder %s20, 0
        %s278 = scalar_select %p277, %s20, 0
        %s279 = sadd.s32 %s278, %s276
        %s280 = smul.addr %s279, 4
        %s281 = scalar_lea.vmem %s3, %s280
        %s282 = smul.u32 3, %s19
        %p283 = scmp.eq.s32.totalorder %s21, 0
        // Predicated region
        $region56: #{agent_nn_forward.5} parent=50 // pred_check
          %p284 = pneg %p283
        $region57: #{agent_nn_forward.5} parent=50 // pred_check_branch
          %286 = sbr.rel (%p284) target = $region59
        $region58: #{agent_nn_forward.5} parent=50 // pred_region
          %287 = vst [vmem:[#allocation2] sm:$0xff] 0.0
          %288 = vst [vmem:[#allocation2 + $0x8] sm:$0xff] 0.0
          %289 = vst [vmem:[#allocation2 + $0x10] sm:$0xff] 0.0
        $region59: #{agent_nn_forward.5} parent=50 // pred_fallthru
          _
        %v290 = vld [vmem:[#allocation2] sm:$0xff]
        %v291 = vld [vmem:[#allocation2 + $0x8] sm:$0xff]
        %v292 = vld [vmem:[#allocation2 + $0x10] sm:$0xff]
        %v293 = vld [vmem:[%s225] sm:$0xff]
        %v294 = vld [vmem:[%s225 + $0x8] sm:$0xff]
        %v295 = vld [vmem:[%s225 + $0x10] sm:$0xff]
        %v296 = vld [vmem:[%s225 + $0x18] sm:$0xff]
        %v297 = vld [vmem:[%s225 + $0x20] sm:$0xff]
        %v298 = vld [vmem:[%s225 + $0x28] sm:$0xff]
        %v299 = vld [vmem:[%s269] sm:$0xf]
        %v300 = vld [vmem:[%s269 + $0x4] sm:$0xf]
        %v301 = vld [vmem:[%s269 + $0x8] sm:$0xf]
        %v302 = vld [vmem:[%s269 + $0xc] sm:$0xf]
        %v303 = vld [vmem:[%s269 + $0x10] sm:$0xf]
        %v304 = vld [vmem:[%s269 + $0x14] sm:$0xf]
        %v305 = vld [vmem:[%s269 + $0x18] sm:$0xf]
        %v306 = vld [vmem:[%s269 + $0x1c] sm:$0xf]
        %v307 = vld [vmem:[%s269 + $0x20] sm:$0xf]
        %v308 = vld [vmem:[%s269 + $0x24] sm:$0xf]
        %v309 = vld [vmem:[%s269 + $0x28] sm:$0xf]
        %v310 = vld [vmem:[%s269 + $0x2c] sm:$0xf]
        %v311 = vld [vmem:[%s269 + $0x30] sm:$0xf]
        %v312 = vld [vmem:[%s269 + $0x34] sm:$0xf]
        %v313 = vld [vmem:[%s269 + $0x38] sm:$0xf]
        %v314 = vld [vmem:[%s269 + $0x3c] sm:$0xf]
        %v315 = vld [vmem:[%s269 + $0x40] sm:$0xf]
        %v316 = vld [vmem:[%s269 + $0x44] sm:$0xf]
        %v317 = vld [vmem:[%s269 + $0x48] sm:$0xf]
        %v318 = vld [vmem:[%s269 + $0x4c] sm:$0xf]
        %v319 = vld [vmem:[%s269 + $0x50] sm:$0xf]
        %v320 = vld [vmem:[%s269 + $0x54] sm:$0xf]
        %v321 = vld [vmem:[%s269 + $0x58] sm:$0xf]
        %v322 = vld [vmem:[%s269 + $0x5c] sm:$0xf]
        %v323 = vld [vmem:[%s269 + $0x60] sm:$0xf]
        %v324 = vld [vmem:[%s269 + $0x64] sm:$0xf]
        %v325 = vld [vmem:[%s269 + $0x68] sm:$0xf]
        %v326 = vld [vmem:[%s269 + $0x6c] sm:$0xf]
        %v327 = vld [vmem:[%s269 + $0x70] sm:$0xf]
        %v328 = vld [vmem:[%s269 + $0x74] sm:$0xf]
        %v329 = vld [vmem:[%s269 + $0x78] sm:$0xf]
        %v330 = vld [vmem:[%s269 + $0x7c] sm:$0xf]
        %v331 = vld [vmem:[%s269 + $0x80] sm:$0xf]
        %v332 = vld [vmem:[%s269 + $0x84] sm:$0xf]
        %v333 = vld [vmem:[%s269 + $0x88] sm:$0xf]
        %v334 = vld [vmem:[%s269 + $0x8c] sm:$0xf]
        %v335 = vld [vmem:[%s269 + $0x90] sm:$0xf]
        %v336 = vld [vmem:[%s269 + $0x94] sm:$0xf]
        %v337 = vld [vmem:[%s269 + $0x98] sm:$0xf]
        %v338 = vld [vmem:[%s269 + $0x9c] sm:$0xf]
        %v339 = vld [vmem:[%s269 + $0xa0] sm:$0xf]
        %v340 = vld [vmem:[%s269 + $0xa4] sm:$0xf]
        %v341 = vld [vmem:[%s269 + $0xa8] sm:$0xf]
        %v342 = vld [vmem:[%s269 + $0xac] sm:$0xf]
        %v343 = vld [vmem:[%s269 + $0xb0] sm:$0xf]
        %v344 = vld [vmem:[%s269 + $0xb4] sm:$0xf]
        %v345 = vld [vmem:[%s269 + $0xb8] sm:$0xf]
        %v346 = vld [vmem:[%s269 + $0xbc] sm:$0xf]
        %v347 = vld [vmem:[%s269 + $0xc0] sm:$0xf]
        %v348 = vld [vmem:[%s269 + $0xc4] sm:$0xf]
        %v349 = vld [vmem:[%s269 + $0xc8] sm:$0xf]
        %v350 = vld [vmem:[%s269 + $0xcc] sm:$0xf]
        %v351 = vld [vmem:[%s269 + $0xd0] sm:$0xf]
        %v352 = vld [vmem:[%s269 + $0xd4] sm:$0xf]
        %v353 = vld [vmem:[%s269 + $0xd8] sm:$0xf]
        %v354 = vld [vmem:[%s269 + $0xdc] sm:$0xf]
        %v355 = vld [vmem:[%s269 + $0xe0] sm:$0xf]
        %v356 = vld [vmem:[%s269 + $0xe4] sm:$0xf]
        %v357 = vld [vmem:[%s269 + $0xe8] sm:$0xf]
        %v358 = vld [vmem:[%s269 + $0xec] sm:$0xf]
        %v359 = vld [vmem:[%s269 + $0xf0] sm:$0xf]
        %v360 = vld [vmem:[%s269 + $0xf4] sm:$0xf]
        %v361 = vld [vmem:[%s269 + $0xf8] sm:$0xf]
        %v362 = vld [vmem:[%s269 + $0xfc] sm:$0xf]
        %v369 = vunpack.c.l.b16 %v293
        %v370 = vunpack.c.h.b16 %v293
        %v371 = vunpack.c.l.b16 %v294
        %v372 = vunpack.c.h.b16 %v294
        %v373 = vunpack.c.l.b16 %v295
        %v374 = vunpack.c.h.b16 %v295
        %v375 = vunpack.c.l.b16 %v296
        %v376 = vunpack.c.h.b16 %v296
        %v377 = vunpack.c.l.b16 %v297
        %v378 = vunpack.c.h.b16 %v297
        %v379 = vunpack.c.l.b16 %v298
        %v380 = vunpack.c.h.b16 %v298
        %v381 = vpack.c.b16 %v373, %v369
        %v382 = vpack.c.b16 %v374, %v370
        %v383 = vpack.c.b16 %v375, %v371
        %v384 = vpack.c.b16 %v376, %v372
        %v385 = vpack.c.b16 %v377, %v377
        %v386 = vpack.c.b16 %v378, %v378
        %v387 = vpack.c.b16 %v379, %v379
        %v388 = vpack.c.b16 %v380, %v380
        %v461 = vunpack.c.l.b16 %v299
        %v462 = vunpack.c.l.b16 %v300
        %v463 = vunpack.c.l.b16 %v301
        %v464 = vunpack.c.l.b16 %v302
        %v465 = vunpack.c.l.b16 %v303
        %v466 = vunpack.c.l.b16 %v304
        %v467 = vunpack.c.l.b16 %v305
        %v468 = vunpack.c.l.b16 %v306
        %v469 = vunpack.c.l.b16 %v307
        %v470 = vunpack.c.l.b16 %v308
        %v471 = vunpack.c.l.b16 %v309
        %v472 = vunpack.c.l.b16 %v310
        %v473 = vunpack.c.l.b16 %v311
        %v474 = vunpack.c.l.b16 %v312
        %v475 = vunpack.c.l.b16 %v313
        %v476 = vunpack.c.l.b16 %v314
        %v477 = vunpack.c.l.b16 %v315
        %v478 = vunpack.c.l.b16 %v316
        %v479 = vunpack.c.l.b16 %v317
        %v480 = vunpack.c.l.b16 %v318
        %v481 = vunpack.c.l.b16 %v319
        %v482 = vunpack.c.l.b16 %v320
        %v483 = vunpack.c.l.b16 %v321
        %v484 = vunpack.c.l.b16 %v322
        %v485 = vunpack.c.l.b16 %v323
        %v486 = vunpack.c.l.b16 %v324
        %v487 = vunpack.c.l.b16 %v325
        %v488 = vunpack.c.l.b16 %v326
        %v489 = vunpack.c.l.b16 %v327
        %v490 = vunpack.c.l.b16 %v328
        %v491 = vunpack.c.l.b16 %v329
        %v492 = vunpack.c.l.b16 %v330
        %v493 = vunpack.c.l.b16 %v331
        %v494 = vunpack.c.l.b16 %v332
        %v495 = vunpack.c.l.b16 %v333
        %v496 = vunpack.c.l.b16 %v334
        %v497 = vunpack.c.l.b16 %v335
        %v498 = vunpack.c.l.b16 %v336
        %v499 = vunpack.c.l.b16 %v337
        %v500 = vunpack.c.l.b16 %v338
        %v501 = vunpack.c.l.b16 %v339
        %v502 = vunpack.c.l.b16 %v340
        %v503 = vunpack.c.l.b16 %v341
        %v504 = vunpack.c.l.b16 %v342
        %v505 = vunpack.c.l.b16 %v343
        %v506 = vunpack.c.l.b16 %v344
        %v507 = vunpack.c.l.b16 %v345
        %v508 = vunpack.c.l.b16 %v346
        %v509 = vunpack.c.l.b16 %v347
        %v510 = vunpack.c.l.b16 %v348
        %v511 = vunpack.c.l.b16 %v349
        %v512 = vunpack.c.l.b16 %v350
        %v513 = vunpack.c.l.b16 %v351
        %v514 = vunpack.c.l.b16 %v352
        %v515 = vunpack.c.l.b16 %v353
        %v516 = vunpack.c.l.b16 %v354
        %v517 = vunpack.c.l.b16 %v355
        %v518 = vunpack.c.l.b16 %v356
        %v519 = vunpack.c.l.b16 %v357
        %v520 = vunpack.c.l.b16 %v358
        %v521 = vunpack.c.l.b16 %v359
        %v522 = vunpack.c.l.b16 %v360
        %v523 = vunpack.c.l.b16 %v361
        %v524 = vunpack.c.l.b16 %v362
        %v525 = vpack.c.b16 %v462, %v461
        %v526 = vpack.c.b16 %v464, %v463
        %v527 = vpack.c.b16 %v466, %v465
        %v528 = vpack.c.b16 %v468, %v467
        %v529 = vpack.c.b16 %v470, %v469
        %v530 = vpack.c.b16 %v472, %v471
        %v531 = vpack.c.b16 %v474, %v473
        %v532 = vpack.c.b16 %v476, %v475
        %v533 = vpack.c.b16 %v478, %v477
        %v534 = vpack.c.b16 %v480, %v479
        %v535 = vpack.c.b16 %v482, %v481
        %v536 = vpack.c.b16 %v484, %v483
        %v537 = vpack.c.b16 %v486, %v485
        %v538 = vpack.c.b16 %v488, %v487
        %v539 = vpack.c.b16 %v490, %v489
        %v540 = vpack.c.b16 %v492, %v491
        %v541 = vpack.c.b16 %v494, %v493
        %v542 = vpack.c.b16 %v496, %v495
        %v543 = vpack.c.b16 %v498, %v497
        %v544 = vpack.c.b16 %v500, %v499
        %v545 = vpack.c.b16 %v502, %v501
        %v546 = vpack.c.b16 %v504, %v503
        %v547 = vpack.c.b16 %v506, %v505
        %v548 = vpack.c.b16 %v508, %v507
        %v549 = vpack.c.b16 %v510, %v509
        %v550 = vpack.c.b16 %v512, %v511
        %v551 = vpack.c.b16 %v514, %v513
        %v552 = vpack.c.b16 %v516, %v515
        %v553 = vpack.c.b16 %v518, %v517
        %v554 = vpack.c.b16 %v520, %v519
        %v555 = vpack.c.b16 %v522, %v521
        %v556 = vpack.c.b16 %v524, %v523
        %589 = vmatpush.bf16.msra.mxu0 %v532
        %590 = vmatpush.bf16.msra.mxu0 %v531
        %591 = vmatpush.bf16.msra.mxu0 %v530
        %592 = vmatpush.bf16.msra.mxu0 %v529
        %593 = vmatpush.bf16.msra.mxu0 %v528
        %594 = vmatpush.bf16.msra.mxu0 %v527
        %595 = vmatpush.bf16.msra.mxu0 %v526
        %596 = vmatpush.bf16.msra.mxu0 %v525
        %597 = vmatmul.bf16.gmra.mxu0 %v381
        %v598 = vpop.f32.mrf.mxu0
        %v599 = vadd.f32 0.0, %v598
        %v600 = vpop.f32.mrf.mxu0
        %v601 = vadd.f32 0.0, %v600
        %602 = vmatmul.bf16.gmra.mxu0 %v385
        %v603 = vpop.f32.mrf.mxu0
        %v604 = vadd.f32 0.0, %v603
        %v605 = vpop.f32.mrf.mxu0
        %606 = vdwg.mxu0
        %607 = vmatpush.bf16.msra.mxu0 %v540
        %608 = vmatpush.bf16.msra.mxu0 %v539
        %609 = vmatpush.bf16.msra.mxu0 %v538
        %610 = vmatpush.bf16.msra.mxu0 %v537
        %611 = vmatpush.bf16.msra.mxu0 %v536
        %612 = vmatpush.bf16.msra.mxu0 %v535
        %613 = vmatpush.bf16.msra.mxu0 %v534
        %614 = vmatpush.bf16.msra.mxu0 %v533
        %615 = vmatmul.bf16.gmra.mxu0 %v382
        %v616 = vpop.f32.mrf.mxu0
        %v617 = vadd.f32 %v599, %v616
        %v618 = vpop.f32.mrf.mxu0
        %v619 = vadd.f32 %v601, %v618
        %620 = vmatmul.bf16.gmra.mxu0 %v386
        %v621 = vpop.f32.mrf.mxu0
        %v622 = vadd.f32 %v604, %v621
        %v623 = vpop.f32.mrf.mxu0
        %624 = vdwg.mxu0
        %625 = vmatpush.bf16.msra.mxu0 %v548
        %626 = vmatpush.bf16.msra.mxu0 %v547
        %627 = vmatpush.bf16.msra.mxu0 %v546
        %628 = vmatpush.bf16.msra.mxu0 %v545
        %629 = vmatpush.bf16.msra.mxu0 %v544
        %630 = vmatpush.bf16.msra.mxu0 %v543
        %631 = vmatpush.bf16.msra.mxu0 %v542
        %632 = vmatpush.bf16.msra.mxu0 %v541
        %633 = vmatmul.bf16.gmra.mxu0 %v383
        %v634 = vpop.f32.mrf.mxu0
        %v635 = vadd.f32 %v617, %v634
        %v636 = vpop.f32.mrf.mxu0
        %v637 = vadd.f32 %v619, %v636
        %638 = vmatmul.bf16.gmra.mxu0 %v387
        %v639 = vpop.f32.mrf.mxu0
        %v640 = vadd.f32 %v622, %v639
        %v641 = vpop.f32.mrf.mxu0
        %642 = vdwg.mxu0
        %643 = vmatpush.bf16.msra.mxu0 %v556
        %644 = vmatpush.bf16.msra.mxu0 %v555
        %645 = vmatpush.bf16.msra.mxu0 %v554
        %646 = vmatpush.bf16.msra.mxu0 %v553
        %647 = vmatpush.bf16.msra.mxu0 %v552
        %648 = vmatpush.bf16.msra.mxu0 %v551
        %649 = vmatpush.bf16.msra.mxu0 %v550
        %650 = vmatpush.bf16.msra.mxu0 %v549
        %651 = vmatmul.bf16.gmra.mxu0 %v384
        %v652 = vpop.f32.mrf.mxu0
        %v653 = vadd.f32 %v635, %v652
        %v654 = vpop.f32.mrf.mxu0
        %v655 = vadd.f32 %v637, %v654
        %656 = vmatmul.bf16.gmra.mxu0 %v388
        %v657 = vpop.f32.mrf.mxu0
        %v658 = vadd.f32 %v640, %v657
        %v659 = vpop.f32.mrf.mxu0
        %660 = vdwg.mxu0
        %v661 = vadd.f32 %v290, %v653
        %v662 = vadd.f32 %v291, %v655
        %v663 = vadd.f32 %v292, %v658
        %664 = vst [vmem:[#allocation2] sm:$0xff] %v661
        %665 = vst [vmem:[#allocation2 + $0x8] sm:$0xff] %v662
        %666 = vst [vmem:[#allocation2 + $0x10] sm:$0xff] %v663
        %p667 = scmp.eq.s32.totalorder %s21, 3
        // Predicated region
        $region60: #{agent_nn_forward.5} parent=50 // pred_check
          %p668 = pneg %p667
        $region61: #{agent_nn_forward.5} parent=50 // pred_check_branch
          %670 = sbr.rel (%p668) target = $region63
        $region62: #{agent_nn_forward.5} parent=50 // pred_region
          %v671 = vld [vmem:[#allocation2] sm:$0xff]
          %v672 = vld [vmem:[#allocation2 + $0x8] sm:$0xff]
          %v673 = vld [vmem:[#allocation2 + $0x10] sm:$0xff]
          %v674 = vld [vmem:[%s273] sm:$0x1]
          %v676 = vperm.slane %v674, 0
          %v678 = vadd.f32 %v671, %v676
          %v679 = vadd.f32 %v672, %v676
          %v680 = vadd.f32 %v673, %v676
          %v681 = vmax.f32 %v678, 0.0
          %v682 = vmax.f32 %v679, 0.0
          %v683 = vmax.f32 %v680, 0.0
          %v684 = vpack.c.bf16 %v681, %v681
          %v685 = vpack.c.bf16 %v682, %v682
          %v686 = vpack.c.bf16 %v683, %v683
          %687 = vst [vmem:[%s281] sm:$0xf] %v684
          %688 = vst [vmem:[%s281 + $0x4] sm:$0xf] %v685
          %689 = vst [vmem:[%s281 + $0x8] sm:$0xf] %v686
        $region63: #{agent_nn_forward.5} parent=50 // pred_fallthru
          _
        %s690 = smul.u32 3, %s19
        %p691 = scmp.lt.s32.totalorder %s690, 2
        %s692 = scalar_select %p691, %s690, 2
        %p693 = scmp.lt.s32.totalorder %s20, 0
        %s694 = scalar_select %p693, %s20, 0
        %s695 = sadd.s32 %s694, %s692
        %s696 = smul.addr %s695, 4
        %s697 = scalar_lea.vmem %s3, %s696
        // Predicated region
        $region64: #{agent_nn_forward.5} parent=50 // pred_check
          %p698 = pneg %p135
        $region65: #{agent_nn_forward.5} parent=50 // pred_check_branch
          %700 = sbr.rel (%p698) target = $region67
        $region66: #{agent_nn_forward.5} parent=50 // pred_region
          %s701 = smul.u32 3, %s19
        $region67: #{agent_nn_forward.5} parent=50 // pred_fallthru
          _
        // Predicated region
        $region68: #{agent_nn_forward.5} parent=50 // pred_check
          %p702 = pneg %p135
        $region69: #{agent_nn_forward.5} parent=50 // pred_check_branch
          %704 = sbr.rel (%p702) target = $region71
        $region70: #{agent_nn_forward.5} parent=50 // pred_region
          %s705 = smul.u32 3, %s19
          %p706 = scmp.lt.s32.totalorder %s705, 2
          %s707 = scalar_select %p706, %s705, 2
          %p708 = scmp.lt.s32.totalorder %s20, 0
          %s709 = scalar_select %p708, %s20, 0
          %s710 = sadd.s32 %s709, %s707
          %s711 = smul.addr %s710, 4
          %s712 = scalar_lea.vmem %s3, %s711
        $region71: #{agent_nn_forward.5} parent=50 // pred_fallthru
          _
      $region51: #{agent_nn_forward.5} parent=5 // pred_fallthru
        _
      %p713 = scmp.le.s32.totalorder 2, %s9
      // Predicated region
      $region72: #{agent_nn_forward.5} parent=5 // pred_check
        %p714 = pneg %p713
      $region73: #{agent_nn_forward.5} parent=5 // pred_check_branch
        %716 = sbr.rel (%p714) target = $region75
      $region74: #{agent_nn_forward.5} parent=5 // pred_region
        %s717 = ssub.s32 %s9, 2
      $region75: #{agent_nn_forward.5} parent=5 // pred_fallthru
        _
    $region6: #{agent_nn_forward.5} parent=1 // loop_footer
      %s13 = sadd.s32 1, %s9
    $region7: #{agent_nn_forward.5} parent=1 // loop_footer_branch
      %8 = sbr.rel target = $region3
    $region8: #{agent_nn_forward.5} parent=1 // loop_exit
      _

// kernel: agent_nn_forward.6
$region0: #{agent_nn_forward.6}
  #allocation0 [shape = 'u32[]', space=smem, size = 0x4, offset = 0x4, fixed_abs, tag = 'smem constant byte address 0x4 - core index']
  #allocation1 [shape = 'u32[72,128]{1,0:T(1,128)}', space=vmem, size = 0x9000, scoped, tag = 'internal scratch']
  #allocation2 [shape = 'f32[8,128]{1,0:T(8,128)}', space=vmem, size = 0x1000, scoped, tag = 'scratch operand']
  %s0 = inlined_call_operand.vmem [shape: bf16[8,1152], index: 0, kind: input, shape index: {}]
  %s1 = inlined_call_operand.vmem [shape: bf16[1152,128], index: 1, kind: input, shape index: {}]
  %s2 = inlined_call_operand.vmem [shape: f32[1,128], index: 2, kind: input, shape index: {}]
  %s3 = inlined_call_operand.vmem [shape: bf16[8,128], index: 3, kind: output, shape index: {}]
  %s4 = sld [smem:[#allocation0]]
  $region53: #{agent_nn_forward.6} parent=0
    _
  %s6 = ssub.s32 1, %s4
  %s7 = scalar_select 0, %s6, %s4
  loop: start=0, step=1, limit=5
  $region2: #{agent_nn_forward.6} parent=0 // loop_pre_header
    _
  $region3: #{agent_nn_forward.6} parent=0 // loop_header
    %s9 = sphi 0, %s13
    %p10 = scmp.ge.s32.totalorder %s9, 5
    %s16 = sphi 0, %s35
    %s17 = sphi 0, %s31
    %s18 = sphi 0, %s27
    %s19 = sphi 0, %s16
    %s20 = sphi 0, %s17
    %s21 = sphi 0, %s18
    %s22 = sphi 0, %s19
    %s23 = sphi 0, %s20
    %s24 = sphi 0, %s21
    %s40 = sphi 0, %s42
    %s43 = sphi 0, %s40
    %s44 = sphi 0, %s43
    %s60 = sphi 0, %s44
    %s68 = sphi 0, %s70
    %s71 = sphi 0, %s68
    %s72 = sphi 0, %s71
    %s88 = sphi 0, %s72
    %s94 = sphi 0, %s96
    %s97 = sphi 0, %s94
    %s98 = sphi 0, %s97
    %s114 = sphi 0, %s98
    %s122 = sphi 0, %s124
    %s125 = sphi 0, %s122
    %s126 = sphi 0, %s125
    %s142 = sphi 0, %s126
  $region4: #{agent_nn_forward.6} parent=0 // loop_header_branch
    %12 = sbr.rel (%p10) target = $region8
  $region5: #{agent_nn_forward.6} parent=0 // loop_body
    %s14 = ssub.s32 %s9, 1
    %s15 = ssub.s32 %s9, 2
    %s25 = sadd.s32 1, %s18
    %p26 = scmp.ge.s32.totalorder %s25, 3
    %s27 = scalar_select %p26, 0, %s25
    %s28 = sadd.s32 1, %s17
    %s29 = scalar_select %p26, %s28, %s17
    %p30 = scmp.ge.s32.totalorder %s29, 1
    %s31 = scalar_select %p30, 0, %s29
    %s32 = sadd.s32 1, %s16
    %s33 = scalar_select %p30, %s32, %s16
    %p34 = scmp.ge.s32.totalorder %s33, 1
    %s35 = scalar_select %p34, 0, %s33
    %s36 = ssub.s32 %s16, %s35
    %s37 = ssub.s32 %s18, %s27
    %s38 = sor.u32 %s36, %s37
    %p39 = scmp.eq.s32.totalorder %s38, 0
    %s41 = sadd.s32 %s40, 1
    %s42 = scalar_select %p39, %s40, %s41
    %p45 = pneg %p39
    %p46 = scmp.eq.s32.totalorder %s9, 2
    %p47 = por %p45, %p46
    %p48 = scmp.ne.s32.totalorder %s40, %s43
    %p49 = scmp.eq.s32.totalorder %s9, 0
    %p50 = por %p48, %p49
    %p51 = scmp.ne.s32.totalorder %s40, %s43
    %p52 = scmp.eq.s32.totalorder %s14, 2
    %p53 = por %p51, %p52
    %p54 = scmp.ne.s32.totalorder %s43, %s44
    %p55 = scmp.eq.s32.totalorder %s14, 0
    %p56 = por %p54, %p55
    %p57 = scmp.ne.s32.totalorder %s43, %s44
    %p58 = scmp.eq.s32.totalorder %s15, 2
    %p59 = por %p57, %p58
    %p61 = scmp.ne.s32.totalorder %s44, %s60
    %p62 = scmp.eq.s32.totalorder %s15, 0
    %p63 = por %p61, %p62
    %s64 = ssub.s32 %s18, %s27
    %s65 = ssub.s32 %s17, %s31
    %s66 = sor.u32 %s64, %s65
    %p67 = scmp.eq.s32.totalorder %s66, 0
    %s69 = sadd.s32 %s68, 1
    %s70 = scalar_select %p67, %s68, %s69
    %p73 = pneg %p67
    %p74 = scmp.eq.s32.totalorder %s9, 2
    %p75 = por %p73, %p74
    %p76 = scmp.ne.s32.totalorder %s68, %s71
    %p77 = scmp.eq.s32.totalorder %s9, 0
    %p78 = por %p76, %p77
    %p79 = scmp.ne.s32.totalorder %s68, %s71
    %p80 = scmp.eq.s32.totalorder %s14, 2
    %p81 = por %p79, %p80
    %p82 = scmp.ne.s32.totalorder %s71, %s72
    %p83 = scmp.eq.s32.totalorder %s14, 0
    %p84 = por %p82, %p83
    %p85 = scmp.ne.s32.totalorder %s71, %s72
    %p86 = scmp.eq.s32.totalorder %s15, 2
    %p87 = por %p85, %p86
    %p89 = scmp.ne.s32.totalorder %s72, %s88
    %p90 = scmp.eq.s32.totalorder %s15, 0
    %p91 = por %p89, %p90
    %s92 = ssub.s32 %s17, %s31
    %p93 = scmp.eq.s32.totalorder %s92, 0
    %s95 = sadd.s32 %s94, 1
    %s96 = scalar_select %p93, %s94, %s95
    %p99 = pneg %p93
    %p100 = scmp.eq.s32.totalorder %s9, 2
    %p101 = por %p99, %p100
    %p102 = scmp.ne.s32.totalorder %s94, %s97
    %p103 = scmp.eq.s32.totalorder %s9, 0
    %p104 = por %p102, %p103
    %p105 = scmp.ne.s32.totalorder %s94, %s97
    %p106 = scmp.eq.s32.totalorder %s14, 2
    %p107 = por %p105, %p106
    %p108 = scmp.ne.s32.totalorder %s97, %s98
    %p109 = scmp.eq.s32.totalorder %s14, 0
    %p110 = por %p108, %p109
    %p111 = scmp.ne.s32.totalorder %s97, %s98
    %p112 = scmp.eq.s32.totalorder %s15, 2
    %p113 = por %p111, %p112
    %p115 = scmp.ne.s32.totalorder %s98, %s114
    %p116 = scmp.eq.s32.totalorder %s15, 0
    %p117 = por %p115, %p116
    %s118 = ssub.s32 %s16, %s35
    %s119 = ssub.s32 %s17, %s31
    %s120 = sor.u32 %s118, %s119
    %p121 = scmp.eq.s32.totalorder %s120, 0
    %s123 = sadd.s32 %s122, 1
    %s124 = scalar_select %p121, %s122, %s123
    %p127 = pneg %p121
    %p128 = scmp.eq.s32.totalorder %s9, 2
    %p129 = por %p127, %p128
    %p130 = scmp.ne.s32.totalorder %s122, %s125
    %p131 = scmp.eq.s32.totalorder %s9, 0
    %p132 = por %p130, %p131
    %p133 = scmp.ne.s32.totalorder %s122, %s125
    %p134 = scmp.eq.s32.totalorder %s14, 2
    %p135 = por %p133, %p134
    %p136 = scmp.ne.s32.totalorder %s125, %s126
    %p137 = scmp.eq.s32.totalorder %s14, 0
    %p138 = por %p136, %p137
    %p139 = scmp.ne.s32.totalorder %s125, %s126
    %p140 = scmp.eq.s32.totalorder %s15, 2
    %p141 = por %p139, %p140
    %p143 = scmp.ne.s32.totalorder %s126, %s142
    %p144 = scmp.eq.s32.totalorder %s15, 0
    %p145 = por %p143, %p144
    %p146 = scmp.le.s32.totalorder 1, %s9
    %p147 = scmp.lt.s32.totalorder %s9, 4
    %p148 = pnand %p146, %p147
    %p149 = pneg %p148
    // Predicated region
    $region9: #{agent_nn_forward.6} parent=5 // pred_check
      _
    $region10: #{agent_nn_forward.6} parent=5 // pred_check_branch
      %151 = sbr.rel (%p148) target = $region12
    $region11: #{agent_nn_forward.6} parent=5 // pred_region
      %s152 = ssub.s32 %s9, 1
      // Predicated region
      $region13: #{agent_nn_forward.6} parent=11 // pred_check
        %p153 = pneg %p110
      $region14: #{agent_nn_forward.6} parent=11 // pred_check_branch
        %155 = sbr.rel (%p153) target = $region16
      $region15: #{agent_nn_forward.6} parent=11 // pred_region
        %p156 = scmp.lt.s32.totalorder %s20, 0
        %s157 = scalar_select %p156, %s20, 0
        %s158 = scalar_lea.vmem %s2, %s157
      $region16: #{agent_nn_forward.6} parent=11 // pred_fallthru
        _
    $region12: #{agent_nn_forward.6} parent=5 // pred_fallthru
      _
    %p159 = scmp.lt.s32.totalorder %s9, 3
    // Predicated region
    $region17: #{agent_nn_forward.6} parent=5 // pred_check
      %p160 = pneg %p159
    $region18: #{agent_nn_forward.6} parent=5 // pred_check_branch
      %162 = sbr.rel (%p160) target = $region20
    $region19: #{agent_nn_forward.6} parent=5 // pred_region
      // Predicated region
      $region21: #{agent_nn_forward.6} parent=19 // pred_check
        %p163 = pneg %p50
      $region22: #{agent_nn_forward.6} parent=19 // pred_check_branch
        %165 = sbr.rel (%p163) target = $region24
      $region23: #{agent_nn_forward.6} parent=19 // pred_region
        %s166 = smul.u32 3, %s18
        %p167 = scmp.lt.s32.totalorder %s16, 0
        %s168 = scalar_select %p167, %s16, 0
        %p169 = scmp.lt.s32.totalorder %s166, 8
        %s170 = scalar_select %p169, %s166, 8
        %s171 = smul.addr %s168, 9
        %s172 = sadd.s32 %s170, %s171
        %s173 = smul.addr %s172, 4
        %s174 = scalar_lea.vmem %s0, %s173
        %s175 = smul.u32 3, %s18
      $region24: #{agent_nn_forward.6} parent=19 // pred_fallthru
        _
      // Predicated region
      $region25: #{agent_nn_forward.6} parent=19 // pred_check
        %p176 = pneg %p78
      $region26: #{agent_nn_forward.6} parent=19 // pred_check_branch
        %178 = sbr.rel (%p176) target = $region28
      $region27: #{agent_nn_forward.6} parent=19 // pred_region
        %s179 = smul.u32 48, %s18
        %p180 = scmp.lt.s32.totalorder %s179, 143
        %s181 = scalar_select %p180, %s179, 143
        %p182 = scmp.lt.s32.totalorder %s17, 0
        %s183 = scalar_select %p182, %s17, 0
        %s184 = sadd.s32 %s183, %s181
        %s185 = smul.addr %s184, 4
        %s186 = scalar_lea.vmem %s1, %s185
        %s187 = smul.u32 48, %s18
      $region28: #{agent_nn_forward.6} parent=19 // pred_fallthru
        _
    $region20: #{agent_nn_forward.6} parent=5 // pred_fallthru
      _
    %p188 = scmp.le.s32.totalorder 1, %s9
    %p189 = scmp.lt.s32.totalorder %s9, 4
    %p190 = pnand %p188, %p189
    %p191 = pneg %p190
    // Predicated region
    $region29: #{agent_nn_forward.6} parent=5 // pred_check
      _
    $region30: #{agent_nn_forward.6} parent=5 // pred_check_branch
      %193 = sbr.rel (%p190) target = $region32
    $region31: #{agent_nn_forward.6} parent=5 // pred_region
      %s194 = ssub.s32 %s9, 1
      %s195 = smul.u32 3, %s21
      %p196 = scmp.lt.s32.totalorder %s19, 0
      %s197 = scalar_select %p196, %s19, 0
      %p198 = scmp.lt.s32.totalorder %s195, 8
      %s199 = scalar_select %p198, %s195, 8
      %s200 = smul.addr %s197, 9
      %s201 = sadd.s32 %s199, %s200
      %s202 = smul.addr %s201, 4
      %s203 = scalar_lea.vmem %s0, %s202
      %p204 = pneg %p56
      %p205 = pneg %p53
      %s206 = smul.u32 48, %s21
      %p207 = scmp.lt.s32.totalorder %s206, 143
      %s208 = scalar_select %p207, %s206, 143
      %p209 = scmp.lt.s32.totalorder %s20, 0
      %s210 = scalar_select %p209, %s20, 0
      %s211 = sadd.s32 %s210, %s208
      %s212 = smul.addr %s211, 4
      %s213 = scalar_lea.vmem %s1, %s212
      %p214 = pneg %p84
      %p215 = pneg %p81
      %p216 = scmp.lt.s32.totalorder %s20, 0
      %s217 = scalar_select %p216, %s20, 0
      %s218 = scalar_lea.vmem %s2, %s217
      %p219 = pneg %p110
      %p220 = pneg %p107
      %p221 = pneg %p138
      %p222 = pneg %p135
      %p223 = scmp.lt.s32.totalorder %s19, 0
      %s224 = scalar_select %p223, %s19, 0
      %p225 = scmp.lt.s32.totalorder %s20, 0
      %s226 = scalar_select %p225, %s20, 0
      %s227 = sadd.s32 %s226, %s224
      %s228 = smul.addr %s227, 4
      %s229 = scalar_lea.vmem %s3, %s228
      %s230 = smul.u32 3, %s21
      %p231 = scmp.lt.s32.totalorder %s19, 0
      %s232 = scalar_select %p231, %s19, 0
      %p233 = scmp.lt.s32.totalorder %s230, 8
      %s234 = scalar_select %p233, %s230, 8
      %s235 = smul.addr %s232, 9
      %s236 = sadd.s32 %s234, %s235
      %s237 = smul.addr %s236, 4
      %s238 = scalar_lea.vmem %s0, %s237
      %s239 = smul.u32 3, %s21
      %s240 = smul.u32 48, %s21
      %p241 = scmp.lt.s32.totalorder %s240, 143
      %s242 = scalar_select %p241, %s240, 143
      %p243 = scmp.lt.s32.totalorder %s20, 0
      %s244 = scalar_select %p243, %s20, 0
      %s245 = sadd.s32 %s244, %s242
      %s246 = smul.addr %s245, 4
      %s247 = scalar_lea.vmem %s1, %s246
      %s248 = smul.u32 48, %s21
      %p249 = scmp.lt.s32.totalorder %s20, 0
      %s250 = scalar_select %p249, %s20, 0
      %s251 = scalar_lea.vmem %s2, %s250
      %p252 = scmp.lt.s32.totalorder %s19, 0
      %s253 = scalar_select %p252, %s19, 0
      %p254 = scmp.lt.s32.totalorder %s20, 0
      %s255 = scalar_select %p254, %s20, 0
      %s256 = sadd.s32 %s255, %s253
      %s257 = smul.addr %s256, 4
      %s258 = scalar_lea.vmem %s3, %s257
      %p259 = scmp.eq.s32.totalorder %s21, 0
      // Predicated region
      $region33: #{agent_nn_forward.6} parent=31 // pred_check
        %p260 = pneg %p259
      $region34: #{agent_nn_forward.6} parent=31 // pred_check_branch
        %262 = sbr.rel (%p260) target = $region36
      $region35: #{agent_nn_forward.6} parent=31 // pred_region
        %263 = vst [vmem:[#allocation2] sm:$0xff] 0.0
      $region36: #{agent_nn_forward.6} parent=31 // pred_fallthru
        _
      %v264 = vld [vmem:[#allocation2] sm:$0xff]
      %v265 = vld [vmem:[%s238] sm:$0xff]
      %v266 = vld [vmem:[%s238 + $0x8] sm:$0xf]
      %v267 = vld [vmem:[%s247] sm:$0xf]
      %v268 = vld [vmem:[%s247 + $0x4] sm:$0xf]
      %v269 = vld [vmem:[%s247 + $0x8] sm:$0xf]
      %v270 = vld [vmem:[%s247 + $0xc] sm:$0xf]
      %v271 = vld [vmem:[%s247 + $0x10] sm:$0xf]
      %v272 = vld [vmem:[%s247 + $0x14] sm:$0xf]
      %v273 = vld [vmem:[%s247 + $0x18] sm:$0xf]
      %v274 = vld [vmem:[%s247 + $0x1c] sm:$0xf]
      %v275 = vld [vmem:[%s247 + $0x20] sm:$0xf]
      %v276 = vld [vmem:[%s247 + $0x24] sm:$0xf]
      %v277 = vld [vmem:[%s247 + $0x28] sm:$0xf]
      %v278 = vld [vmem:[%s247 + $0x2c] sm:$0xf]
      %v279 = vld [vmem:[%s247 + $0x30] sm:$0xf]
      %v280 = vld [vmem:[%s247 + $0x34] sm:$0xf]
      %v281 = vld [vmem:[%s247 + $0x38] sm:$0xf]
      %v282 = vld [vmem:[%s247 + $0x3c] sm:$0xf]
      %v283 = vld [vmem:[%s247 + $0x40] sm:$0xf]
      %v284 = vld [vmem:[%s247 + $0x44] sm:$0xf]
      %v285 = vld [vmem:[%s247 + $0x48] sm:$0xf]
      %v286 = vld [vmem:[%s247 + $0x4c] sm:$0xf]
      %v287 = vld [vmem:[%s247 + $0x50] sm:$0xf]
      %v288 = vld [vmem:[%s247 + $0x54] sm:$0xf]
      %v289 = vld [vmem:[%s247 + $0x58] sm:$0xf]
      %v290 = vld [vmem:[%s247 + $0x5c] sm:$0xf]
      %v291 = vld [vmem:[%s247 + $0x60] sm:$0xf]
      %v292 = vld [vmem:[%s247 + $0x64] sm:$0xf]
      %v293 = vld [vmem:[%s247 + $0x68] sm:$0xf]
      %v294 = vld [vmem:[%s247 + $0x6c] sm:$0xf]
      %v295 = vld [vmem:[%s247 + $0x70] sm:$0xf]
      %v296 = vld [vmem:[%s247 + $0x74] sm:$0xf]
      %v297 = vld [vmem:[%s247 + $0x78] sm:$0xf]
      %v298 = vld [vmem:[%s247 + $0x7c] sm:$0xf]
      %v299 = vld [vmem:[%s247 + $0x80] sm:$0xf]
      %v300 = vld [vmem:[%s247 + $0x84] sm:$0xf]
      %v301 = vld [vmem:[%s247 + $0x88] sm:$0xf]
      %v302 = vld [vmem:[%s247 + $0x8c] sm:$0xf]
      %v303 = vld [vmem:[%s247 + $0x90] sm:$0xf]
      %v304 = vld [vmem:[%s247 + $0x94] sm:$0xf]
      %v305 = vld [vmem:[%s247 + $0x98] sm:$0xf]
      %v306 = vld [vmem:[%s247 + $0x9c] sm:$0xf]
      %v307 = vld [vmem:[%s247 + $0xa0] sm:$0xf]
      %v308 = vld [vmem:[%s247 + $0xa4] sm:$0xf]
      %v309 = vld [vmem:[%s247 + $0xa8] sm:$0xf]
      %v310 = vld [vmem:[%s247 + $0xac] sm:$0xf]
      %v311 = vld [vmem:[%s247 + $0xb0] sm:$0xf]
      %v312 = vld [vmem:[%s247 + $0xb4] sm:$0xf]
      %v313 = vld [vmem:[%s247 + $0xb8] sm:$0xf]
      %v314 = vld [vmem:[%s247 + $0xbc] sm:$0xf]
      %v317 = vunpack.c.l.b16 %v265
      %v318 = vunpack.c.h.b16 %v265
      %v319 = vunpack.c.l.b16 %v266
      %v320 = vpack.c.b16 %v317, %v317
      %v321 = vpack.c.b16 %v318, %v318
      %v322 = vpack.c.b16 %v319, %v319
      %v374 = vunpack.c.l.b16 %v267
      %v375 = vunpack.c.l.b16 %v268
      %v376 = vunpack.c.l.b16 %v269
      %v377 = vunpack.c.l.b16 %v270
      %v378 = vunpack.c.l.b16 %v271
      %v379 = vunpack.c.l.b16 %v272
      %v380 = vunpack.c.l.b16 %v273
      %v381 = vunpack.c.l.b16 %v274
      %v382 = vunpack.c.l.b16 %v275
      %v383 = vunpack.c.l.b16 %v276
      %v384 = vunpack.c.l.b16 %v277
      %v385 = vunpack.c.l.b16 %v278
      %v386 = vunpack.c.l.b16 %v279
      %v387 = vunpack.c.l.b16 %v280
      %v388 = vunpack.c.l.b16 %v281
      %v389 = vunpack.c.l.b16 %v282
      %v390 = vunpack.c.l.b16 %v283
      %v391 = vunpack.c.l.b16 %v284
      %v392 = vunpack.c.l.b16 %v285
      %v393 = vunpack.c.l.b16 %v286
      %v394 = vunpack.c.l.b16 %v287
      %v395 = vunpack.c.l.b16 %v288
      %v396 = vunpack.c.l.b16 %v289
      %v397 = vunpack.c.l.b16 %v290
      %v398 = vunpack.c.l.b16 %v291
      %v399 = vunpack.c.l.b16 %v292
      %v400 = vunpack.c.l.b16 %v293
      %v401 = vunpack.c.l.b16 %v294
      %v402 = vunpack.c.l.b16 %v295
      %v403 = vunpack.c.l.b16 %v296
      %v404 = vunpack.c.l.b16 %v297
      %v405 = vunpack.c.l.b16 %v298
      %v406 = vunpack.c.l.b16 %v299
      %v407 = vunpack.c.l.b16 %v300
      %v408 = vunpack.c.l.b16 %v301
      %v409 = vunpack.c.l.b16 %v302
      %v410 = vunpack.c.l.b16 %v303
      %v411 = vunpack.c.l.b16 %v304
      %v412 = vunpack.c.l.b16 %v305
      %v413 = vunpack.c.l.b16 %v306
      %v414 = vunpack.c.l.b16 %v307
      %v415 = vunpack.c.l.b16 %v308
      %v416 = vunpack.c.l.b16 %v309
      %v417 = vunpack.c.l.b16 %v310
      %v418 = vunpack.c.l.b16 %v311
      %v419 = vunpack.c.l.b16 %v312
      %v420 = vunpack.c.l.b16 %v313
      %v421 = vunpack.c.l.b16 %v314
      %v422 = vpack.c.b16 %v375, %v374
      %v423 = vpack.c.b16 %v377, %v376
      %v424 = vpack.c.b16 %v379, %v378
      %v425 = vpack.c.b16 %v381, %v380
      %v426 = vpack.c.b16 %v383, %v382
      %v427 = vpack.c.b16 %v385, %v384
      %v428 = vpack.c.b16 %v387, %v386
      %v429 = vpack.c.b16 %v389, %v388
      %v430 = vpack.c.b16 %v391, %v390
      %v431 = vpack.c.b16 %v393, %v392
      %v432 = vpack.c.b16 %v395, %v394
      %v433 = vpack.c.b16 %v397, %v396
      %v434 = vpack.c.b16 %v399, %v398
      %v435 = vpack.c.b16 %v401, %v400
      %v436 = vpack.c.b16 %v403, %v402
      %v437 = vpack.c.b16 %v405, %v404
      %v438 = vpack.c.b16 %v407, %v406
      %v439 = vpack.c.b16 %v409, %v408
      %v440 = vpack.c.b16 %v411, %v410
      %v441 = vpack.c.b16 %v413, %v412
      %v442 = vpack.c.b16 %v415, %v414
      %v443 = vpack.c.b16 %v417, %v416
      %v444 = vpack.c.b16 %v419, %v418
      %v445 = vpack.c.b16 %v421, %v420
      %470 = vmatpush.bf16.msra.mxu0 %v429
      %471 = vmatpush.bf16.msra.mxu0 %v428
      %472 = vmatpush.bf16.msra.mxu0 %v427
      %473 = vmatpush.bf16.msra.mxu0 %v426
      %474 = vmatpush.bf16.msra.mxu0 %v425
      %475 = vmatpush.bf16.msra.mxu0 %v424
      %476 = vmatpush.bf16.msra.mxu0 %v423
      %477 = vmatpush.bf16.msra.mxu0 %v422
      %478 = vmatmul.bf16.gmra.mxu0 %v320
      %v479 = vpop.f32.mrf.mxu0
      %v480 = vadd.f32 0.0, %v479
      %v481 = vpop.f32.mrf.mxu0
      %482 = vdwg.mxu0
      %483 = vmatpush.bf16.msra.mxu0 %v437
      %484 = vmatpush.bf16.msra.mxu0 %v436
      %485 = vmatpush.bf16.msra.mxu0 %v435
      %486 = vmatpush.bf16.msra.mxu0 %v434
      %487 = vmatpush.bf16.msra.mxu0 %v433
      %488 = vmatpush.bf16.msra.mxu0 %v432
      %489 = vmatpush.bf16.msra.mxu0 %v431
      %490 = vmatpush.bf16.msra.mxu0 %v430
      %491 = vmatmul.bf16.gmra.mxu0 %v321
      %v492 = vpop.f32.mrf.mxu0
      %v493 = vadd.f32 %v480, %v492
      %v494 = vpop.f32.mrf.mxu0
      %495 = vdwg.mxu0
      %496 = vmatpush.bf16.msra.mxu0 %v445
      %497 = vmatpush.bf16.msra.mxu0 %v444
      %498 = vmatpush.bf16.msra.mxu0 %v443
      %499 = vmatpush.bf16.msra.mxu0 %v442
      %500 = vmatpush.bf16.msra.mxu0 %v441
      %501 = vmatpush.bf16.msra.mxu0 %v440
      %502 = vmatpush.bf16.msra.mxu0 %v439
      %503 = vmatpush.bf16.msra.mxu0 %v438
      %504 = vmatmul.bf16.gmra.mxu0 %v322
      %v505 = vpop.f32.mrf.mxu0
      %v506 = vadd.f32 %v493, %v505
      %v507 = vpop.f32.mrf.mxu0
      %508 = vdwg.mxu0
      %v509 = vadd.f32 %v264, %v506
      %510 = vst [vmem:[#allocation2] sm:$0xff] %v509
      %p511 = scmp.eq.s32.totalorder %s21, 2
      // Predicated region
      $region37: #{agent_nn_forward.6} parent=31 // pred_check
        %p512 = pneg %p511
      $region38: #{agent_nn_forward.6} parent=31 // pred_check_branch
        %514 = sbr.rel (%p512) target = $region40
      $region39: #{agent_nn_forward.6} parent=31 // pred_region
        %v515 = vld [vmem:[#allocation2] sm:$0xff]
        %v516 = vld [vmem:[%s251] sm:$0x1]
        %v518 = vperm.slane %v516, 0
        %v520 = vadd.f32 %v515, %v518
        %v521 = vmax.f32 %v520, 0.0
        %v522 = vpack.c.bf16 %v521, %v521
        %523 = vst [vmem:[%s258] sm:$0xf] %v522
      $region40: #{agent_nn_forward.6} parent=31 // pred_fallthru
        _
      %p524 = scmp.lt.s32.totalorder %s19, 0
      %s525 = scalar_select %p524, %s19, 0
      %p526 = scmp.lt.s32.totalorder %s20, 0
      %s527 = scalar_select %p526, %s20, 0
      %s528 = sadd.s32 %s527, %s525
      %s529 = smul.addr %s528, 4
      %s530 = scalar_lea.vmem %s3, %s529
      // Predicated region
      $region41: #{agent_nn_forward.6} parent=31 // pred_check
        %p531 = pneg %p135
      $region42: #{agent_nn_forward.6} parent=31 // pred_check_branch
        %533 = sbr.rel (%p531) target = $region44
      $region43: #{agent_nn_forward.6} parent=31 // pred_region
        _
      $region44: #{agent_nn_forward.6} parent=31 // pred_fallthru
        _
      // Predicated region
      $region45: #{agent_nn_forward.6} parent=31 // pred_check
        %p534 = pneg %p135
      $region46: #{agent_nn_forward.6} parent=31 // pred_check_branch
        %536 = sbr.rel (%p534) target = $region48
      $region47: #{agent_nn_forward.6} parent=31 // pred_region
        %p537 = scmp.lt.s32.totalorder %s19, 0
        %s538 = scalar_select %p537, %s19, 0
        %p539 = scmp.lt.s32.totalorder %s20, 0
        %s540 = scalar_select %p539, %s20, 0
        %s541 = sadd.s32 %s540, %s538
        %s542 = smul.addr %s541, 4
        %s543 = scalar_lea.vmem %s3, %s542
      $region48: #{agent_nn_forward.6} parent=31 // pred_fallthru
        _
    $region32: #{agent_nn_forward.6} parent=5 // pred_fallthru
      _
    %p544 = scmp.le.s32.totalorder 2, %s9
    // Predicated region
    $region49: #{agent_nn_forward.6} parent=5 // pred_check
      %p545 = pneg %p544
    $region50: #{agent_nn_forward.6} parent=5 // pred_check_branch
      %547 = sbr.rel (%p545) target = $region52
    $region51: #{agent_nn_forward.6} parent=5 // pred_region
      %s548 = ssub.s32 %s9, 2
    $region52: #{agent_nn_forward.6} parent=5 // pred_fallthru
      _
  $region6: #{agent_nn_forward.6} parent=0 // loop_footer
    %s13 = sadd.s32 1, %s9
  $region7: #{agent_nn_forward.6} parent=0 // loop_footer_branch
    %8 = sbr.rel target = $region3
  $region8: #{agent_nn_forward.6} parent=0 // loop_exit
    _

// kernel: agent_nn_forward.7
$region0: #{agent_nn_forward.7}
  #allocation0 [shape = 'u32[]', space=smem, size = 0x4, offset = 0x4, fixed_abs, tag = 'smem constant byte address 0x4 - core index']
  #allocation1 [shape = 'u32[72,128]{1,0:T(1,128)}', space=vmem, size = 0x9000, scoped, tag = 'internal scratch']
  %s0 = inlined_call_operand.vmem [shape: bf16[8,128], index: 0, kind: input, shape index: {}]
  %s1 = inlined_call_operand.vmem [shape: bf16[128,512], index: 1, kind: input, shape index: {}]
  %s2 = inlined_call_operand.vmem [shape: f32[1,512], index: 2, kind: input, shape index: {}]
  %s3 = inlined_call_operand.vmem [shape: bf16[512,128], index: 3, kind: input, shape index: {}]
  %s4 = inlined_call_operand.vmem [shape: f32[1,128], index: 4, kind: input, shape index: {}]
  %s5 = inlined_call_operand.vmem [shape: f32[8,128], index: 5, kind: output, shape index: {}]
  %s6 = sld [smem:[#allocation0]]
  $region30: #{agent_nn_forward.7} parent=0
    _
  %s8 = ssub.s32 1, %s6
  %s9 = scalar_select 0, %s8, %s6
  // Predicated region
  $region2: #{agent_nn_forward.7} parent=0 // pred_check
    _
  $region3: #{agent_nn_forward.7} parent=0 // pred_check_branch
    %11 = sbr.rel (0) target = $region5
  $region4: #{agent_nn_forward.7} parent=0 // pred_region
    _
  $region5: #{agent_nn_forward.7} parent=0 // pred_fallthru
    _
  // Predicated region
  $region6: #{agent_nn_forward.7} parent=0 // pred_check
    _
  $region7: #{agent_nn_forward.7} parent=0 // pred_check_branch
    %13 = sbr.rel (0) target = $region9
  $region8: #{agent_nn_forward.7} parent=0 // pred_region
    _
  $region9: #{agent_nn_forward.7} parent=0 // pred_fallthru
    _
  // Predicated region
  $region10: #{agent_nn_forward.7} parent=0 // pred_check
    _
  $region11: #{agent_nn_forward.7} parent=0 // pred_check_branch
    %15 = sbr.rel (0) target = $region13
  $region12: #{agent_nn_forward.7} parent=0 // pred_region
    _
  $region13: #{agent_nn_forward.7} parent=0 // pred_fallthru
    _
  // Predicated region
  $region14: #{agent_nn_forward.7} parent=0 // pred_check
    _
  $region15: #{agent_nn_forward.7} parent=0 // pred_check_branch
    %17 = sbr.rel (0) target = $region17
  $region16: #{agent_nn_forward.7} parent=0 // pred_region
    _
  $region17: #{agent_nn_forward.7} parent=0 // pred_fallthru
    _
  // Predicated region
  $region18: #{agent_nn_forward.7} parent=0 // pred_check
    _
  $region19: #{agent_nn_forward.7} parent=0 // pred_check_branch
    %19 = sbr.rel (0) target = $region21
  $region20: #{agent_nn_forward.7} parent=0 // pred_region
    _
  $region21: #{agent_nn_forward.7} parent=0 // pred_fallthru
    _
  %v20 = vld [vmem:[%s0] sm:$0xf]
  %v21 = vld [vmem:[%s1] sm:$0xff]
  %v22 = vld [vmem:[%s1 + $0x8] sm:$0xff]
  %v23 = vld [vmem:[%s1 + $0x10] sm:$0xff]
  %v24 = vld [vmem:[%s1 + $0x18] sm:$0xff]
  %v25 = vld [vmem:[%s1 + $0x20] sm:$0xff]
  %v26 = vld [vmem:[%s1 + $0x28] sm:$0xff]
  %v27 = vld [vmem:[%s1 + $0x30] sm:$0xff]
  %v28 = vld [vmem:[%s1 + $0x38] sm:$0xff]
  %v29 = vld [vmem:[%s1 + $0x40] sm:$0xff]
  %v30 = vld [vmem:[%s1 + $0x48] sm:$0xff]
  %v31 = vld [vmem:[%s1 + $0x50] sm:$0xff]
  %v32 = vld [vmem:[%s1 + $0x58] sm:$0xff]
  %v33 = vld [vmem:[%s1 + $0x60] sm:$0xff]
  %v34 = vld [vmem:[%s1 + $0x68] sm:$0xff]
  %v35 = vld [vmem:[%s1 + $0x70] sm:$0xff]
  %v36 = vld [vmem:[%s1 + $0x78] sm:$0xff]
  %v37 = vld [vmem:[%s1 + $0x80] sm:$0xff]
  %v38 = vld [vmem:[%s1 + $0x88] sm:$0xff]
  %v39 = vld [vmem:[%s1 + $0x90] sm:$0xff]
  %v40 = vld [vmem:[%s1 + $0x98] sm:$0xff]
  %v41 = vld [vmem:[%s1 + $0xa0] sm:$0xff]
  %v42 = vld [vmem:[%s1 + $0xa8] sm:$0xff]
  %v43 = vld [vmem:[%s1 + $0xb0] sm:$0xff]
  %v44 = vld [vmem:[%s1 + $0xb8] sm:$0xff]
  %v45 = vld [vmem:[%s1 + $0xc0] sm:$0xff]
  %v46 = vld [vmem:[%s1 + $0xc8] sm:$0xff]
  %v47 = vld [vmem:[%s1 + $0xd0] sm:$0xff]
  %v48 = vld [vmem:[%s1 + $0xd8] sm:$0xff]
  %v49 = vld [vmem:[%s1 + $0xe0] sm:$0xff]
  %v50 = vld [vmem:[%s1 + $0xe8] sm:$0xff]
  %v51 = vld [vmem:[%s1 + $0xf0] sm:$0xff]
  %v52 = vld [vmem:[%s1 + $0xf8] sm:$0xff]
  %v53 = vld [vmem:[%s2] sm:$0xf]
  %v55 = vperm.slane %v53, 0
  %v56 = vperm.slane %v53, 1
  %v57 = vperm.slane %v53, 2
  %v58 = vperm.slane %v53, 3
  %v95 = vunpack.c.l.b16 %v21
  %v96 = vunpack.c.h.b16 %v21
  %v97 = vunpack.c.l.b16 %v22
  %v98 = vunpack.c.h.b16 %v22
  %v99 = vunpack.c.l.b16 %v23
  %v100 = vunpack.c.h.b16 %v23
  %v101 = vunpack.c.l.b16 %v24
  %v102 = vunpack.c.h.b16 %v24
  %v103 = vunpack.c.l.b16 %v25
  %v104 = vunpack.c.h.b16 %v25
  %v105 = vunpack.c.l.b16 %v26
  %v106 = vunpack.c.h.b16 %v26
  %v107 = vunpack.c.l.b16 %v27
  %v108 = vunpack.c.h.b16 %v27
  %v109 = vunpack.c.l.b16 %v28
  %v110 = vunpack.c.h.b16 %v28
  %v111 = vunpack.c.l.b16 %v29
  %v112 = vunpack.c.h.b16 %v29
  %v113 = vunpack.c.l.b16 %v30
  %v114 = vunpack.c.h.b16 %v30
  %v115 = vunpack.c.l.b16 %v31
  %v116 = vunpack.c.h.b16 %v31
  %v117 = vunpack.c.l.b16 %v32
  %v118 = vunpack.c.h.b16 %v32
  %v119 = vunpack.c.l.b16 %v33
  %v120 = vunpack.c.h.b16 %v33
  %v121 = vunpack.c.l.b16 %v34
  %v122 = vunpack.c.h.b16 %v34
  %v123 = vunpack.c.l.b16 %v35
  %v124 = vunpack.c.h.b16 %v35
  %v125 = vunpack.c.l.b16 %v36
  %v126 = vunpack.c.h.b16 %v36
  %v127 = vunpack.c.l.b16 %v37
  %v128 = vunpack.c.h.b16 %v37
  %v129 = vunpack.c.l.b16 %v38
  %v130 = vunpack.c.h.b16 %v38
  %v131 = vunpack.c.l.b16 %v39
  %v132 = vunpack.c.h.b16 %v39
  %v133 = vunpack.c.l.b16 %v40
  %v134 = vunpack.c.h.b16 %v40
  %v135 = vunpack.c.l.b16 %v41
  %v136 = vunpack.c.h.b16 %v41
  %v137 = vunpack.c.l.b16 %v42
  %v138 = vunpack.c.h.b16 %v42
  %v139 = vunpack.c.l.b16 %v43
  %v140 = vunpack.c.h.b16 %v43
  %v141 = vunpack.c.l.b16 %v44
  %v142 = vunpack.c.h.b16 %v44
  %v143 = vunpack.c.l.b16 %v45
  %v144 = vunpack.c.h.b16 %v45
  %v145 = vunpack.c.l.b16 %v46
  %v146 = vunpack.c.h.b16 %v46
  %v147 = vunpack.c.l.b16 %v47
  %v148 = vunpack.c.h.b16 %v47
  %v149 = vunpack.c.l.b16 %v48
  %v150 = vunpack.c.h.b16 %v48
  %v151 = vunpack.c.l.b16 %v49
  %v152 = vunpack.c.h.b16 %v49
  %v153 = vunpack.c.l.b16 %v50
  %v154 = vunpack.c.h.b16 %v50
  %v155 = vunpack.c.l.b16 %v51
  %v156 = vunpack.c.h.b16 %v51
  %v157 = vunpack.c.l.b16 %v52
  %v158 = vunpack.c.h.b16 %v52
  %v159 = vpack.c.b16 %v99, %v95
  %v160 = vpack.c.b16 %v100, %v96
  %v161 = vpack.c.b16 %v101, %v97
  %v162 = vpack.c.b16 %v102, %v98
  %v163 = vpack.c.b16 %v107, %v103
  %v164 = vpack.c.b16 %v108, %v104
  %v165 = vpack.c.b16 %v109, %v105
  %v166 = vpack.c.b16 %v110, %v106
  %v167 = vpack.c.b16 %v115, %v111
  %v168 = vpack.c.b16 %v116, %v112
  %v169 = vpack.c.b16 %v117, %v113
  %v170 = vpack.c.b16 %v118, %v114
  %v171 = vpack.c.b16 %v123, %v119
  %v172 = vpack.c.b16 %v124, %v120
  %v173 = vpack.c.b16 %v125, %v121
  %v174 = vpack.c.b16 %v126, %v122
  %v175 = vpack.c.b16 %v131, %v127
  %v176 = vpack.c.b16 %v132, %v128
  %v177 = vpack.c.b16 %v133, %v129
  %v178 = vpack.c.b16 %v134, %v130
  %v179 = vpack.c.b16 %v139, %v135
  %v180 = vpack.c.b16 %v140, %v136
  %v181 = vpack.c.b16 %v141, %v137
  %v182 = vpack.c.b16 %v142, %v138
  %v183 = vpack.c.b16 %v147, %v143
  %v184 = vpack.c.b16 %v148, %v144
  %v185 = vpack.c.b16 %v149, %v145
  %v186 = vpack.c.b16 %v150, %v146
  %v187 = vpack.c.b16 %v155, %v151
  %v188 = vpack.c.b16 %v156, %v152
  %v189 = vpack.c.b16 %v157, %v153
  %v190 = vpack.c.b16 %v158, %v154
  %223 = vmatpush.bf16.msra.mxu0 %v187
  %224 = vmatpush.bf16.msra.mxu0 %v183
  %225 = vmatpush.bf16.msra.mxu0 %v179
  %226 = vmatpush.bf16.msra.mxu0 %v175
  %227 = vmatpush.bf16.msra.mxu0 %v171
  %228 = vmatpush.bf16.msra.mxu0 %v167
  %229 = vmatpush.bf16.msra.mxu0 %v163
  %230 = vmatpush.bf16.msra.mxu0 %v159
  %231 = vmatmul.bf16.gmra.mxu0 %v20
  %v232 = vpop.f32.mrf.mxu0
  %v233 = vadd.f32 %v55, %v232
  %v234 = vpop.f32.mrf.mxu0
  %235 = vdwg.mxu0
  %236 = vmatpush.bf16.msra.mxu0 %v188
  %237 = vmatpush.bf16.msra.mxu0 %v184
  %238 = vmatpush.bf16.msra.mxu0 %v180
  %239 = vmatpush.bf16.msra.mxu0 %v176
  %240 = vmatpush.bf16.msra.mxu0 %v172
  %241 = vmatpush.bf16.msra.mxu0 %v168
  %242 = vmatpush.bf16.msra.mxu0 %v164
  %243 = vmatpush.bf16.msra.mxu0 %v160
  %244 = vmatmul.bf16.gmra.mxu0 %v20
  %v245 = vpop.f32.mrf.mxu0
  %v246 = vadd.f32 %v56, %v245
  %v247 = vpop.f32.mrf.mxu0
  %248 = vdwg.mxu0
  %249 = vmatpush.bf16.msra.mxu0 %v189
  %250 = vmatpush.bf16.msra.mxu0 %v185
  %251 = vmatpush.bf16.msra.mxu0 %v181
  %252 = vmatpush.bf16.msra.mxu0 %v177
  %253 = vmatpush.bf16.msra.mxu0 %v173
  %254 = vmatpush.bf16.msra.mxu0 %v169
  %255 = vmatpush.bf16.msra.mxu0 %v165
  %256 = vmatpush.bf16.msra.mxu0 %v161
  %257 = vmatmul.bf16.gmra.mxu0 %v20
  %v258 = vpop.f32.mrf.mxu0
  %v259 = vadd.f32 %v57, %v258
  %v260 = vpop.f32.mrf.mxu0
  %261 = vdwg.mxu0
  %262 = vmatpush.bf16.msra.mxu0 %v190
  %263 = vmatpush.bf16.msra.mxu0 %v186
  %264 = vmatpush.bf16.msra.mxu0 %v182
  %265 = vmatpush.bf16.msra.mxu0 %v178
  %266 = vmatpush.bf16.msra.mxu0 %v174
  %267 = vmatpush.bf16.msra.mxu0 %v170
  %268 = vmatpush.bf16.msra.mxu0 %v166
  %269 = vmatpush.bf16.msra.mxu0 %v162
  %270 = vmatmul.bf16.gmra.mxu0 %v20
  %v271 = vpop.f32.mrf.mxu0
  %v272 = vadd.f32 %v58, %v271
  %v273 = vpop.f32.mrf.mxu0
  %274 = vdwg.mxu0
  %v275 = vmax.f32 %v233, 0.0
  %v276 = vmax.f32 %v246, 0.0
  %v277 = vmax.f32 %v259, 0.0
  %v278 = vmax.f32 %v272, 0.0
  %v279 = vpack.c.bf16 %v275, %v275
  %v280 = vpack.c.bf16 %v276, %v276
  %v281 = vpack.c.bf16 %v277, %v277
  %v282 = vpack.c.bf16 %v278, %v278
  %v283 = vld [vmem:[%s3] sm:$0xf]
  %v284 = vld [vmem:[%s3 + $0x4] sm:$0xf]
  %v285 = vld [vmem:[%s3 + $0x8] sm:$0xf]
  %v286 = vld [vmem:[%s3 + $0xc] sm:$0xf]
  %v287 = vld [vmem:[%s3 + $0x10] sm:$0xf]
  %v288 = vld [vmem:[%s3 + $0x14] sm:$0xf]
  %v289 = vld [vmem:[%s3 + $0x18] sm:$0xf]
  %v290 = vld [vmem:[%s3 + $0x1c] sm:$0xf]
  %v291 = vld [vmem:[%s3 + $0x20] sm:$0xf]
  %v292 = vld [vmem:[%s3 + $0x24] sm:$0xf]
  %v293 = vld [vmem:[%s3 + $0x28] sm:$0xf]
  %v294 = vld [vmem:[%s3 + $0x2c] sm:$0xf]
  %v295 = vld [vmem:[%s3 + $0x30] sm:$0xf]
  %v296 = vld [vmem:[%s3 + $0x34] sm:$0xf]
  %v297 = vld [vmem:[%s3 + $0x38] sm:$0xf]
  %v298 = vld [vmem:[%s3 + $0x3c] sm:$0xf]
  %v299 = vld [vmem:[%s3 + $0x40] sm:$0xf]
  %v300 = vld [vmem:[%s3 + $0x44] sm:$0xf]
  %v301 = vld [vmem:[%s3 + $0x48] sm:$0xf]
  %v302 = vld [vmem:[%s3 + $0x4c] sm:$0xf]
  %v303 = vld [vmem:[%s3 + $0x50] sm:$0xf]
  %v304 = vld [vmem:[%s3 + $0x54] sm:$0xf]
  %v305 = vld [vmem:[%s3 + $0x58] sm:$0xf]
  %v306 = vld [vmem:[%s3 + $0x5c] sm:$0xf]
  %v307 = vld [vmem:[%s3 + $0x60] sm:$0xf]
  %v308 = vld [vmem:[%s3 + $0x64] sm:$0xf]
  %v309 = vld [vmem:[%s3 + $0x68] sm:$0xf]
  %v310 = vld [vmem:[%s3 + $0x6c] sm:$0xf]
  %v311 = vld [vmem:[%s3 + $0x70] sm:$0xf]
  %v312 = vld [vmem:[%s3 + $0x74] sm:$0xf]
  %v313 = vld [vmem:[%s3 + $0x78] sm:$0xf]
  %v314 = vld [vmem:[%s3 + $0x7c] sm:$0xf]
  %v315 = vld [vmem:[%s3 + $0x80] sm:$0xf]
  %v316 = vld [vmem:[%s3 + $0x84] sm:$0xf]
  %v317 = vld [vmem:[%s3 + $0x88] sm:$0xf]
  %v318 = vld [vmem:[%s3 + $0x8c] sm:$0xf]
  %v319 = vld [vmem:[%s3 + $0x90] sm:$0xf]
  %v320 = vld [vmem:[%s3 + $0x94] sm:$0xf]
  %v321 = vld [vmem:[%s3 + $0x98] sm:$0xf]
  %v322 = vld [vmem:[%s3 + $0x9c] sm:$0xf]
  %v323 = vld [vmem:[%s3 + $0xa0] sm:$0xf]
  %v324 = vld [vmem:[%s3 + $0xa4] sm:$0xf]
  %v325 = vld [vmem:[%s3 + $0xa8] sm:$0xf]
  %v326 = vld [vmem:[%s3 + $0xac] sm:$0xf]
  %v327 = vld [vmem:[%s3 + $0xb0] sm:$0xf]
  %v328 = vld [vmem:[%s3 + $0xb4] sm:$0xf]
  %v329 = vld [vmem:[%s3 + $0xb8] sm:$0xf]
  %v330 = vld [vmem:[%s3 + $0xbc] sm:$0xf]
  %v331 = vld [vmem:[%s3 + $0xc0] sm:$0xf]
  %v332 = vld [vmem:[%s3 + $0xc4] sm:$0xf]
  %v333 = vld [vmem:[%s3 + $0xc8] sm:$0xf]
  %v334 = vld [vmem:[%s3 + $0xcc] sm:$0xf]
  %v335 = vld [vmem:[%s3 + $0xd0] sm:$0xf]
  %v336 = vld [vmem:[%s3 + $0xd4] sm:$0xf]
  %v337 = vld [vmem:[%s3 + $0xd8] sm:$0xf]
  %v338 = vld [vmem:[%s3 + $0xdc] sm:$0xf]
  %v339 = vld [vmem:[%s3 + $0xe0] sm:$0xf]
  %v340 = vld [vmem:[%s3 + $0xe4] sm:$0xf]
  %v341 = vld [vmem:[%s3 + $0xe8] sm:$0xf]
  %v342 = vld [vmem:[%s3 + $0xec] sm:$0xf]
  %v343 = vld [vmem:[%s3 + $0xf0] sm:$0xf]
  %v344 = vld [vmem:[%s3 + $0xf4] sm:$0xf]
  %v345 = vld [vmem:[%s3 + $0xf8] sm:$0xf]
  %v346 = vld [vmem:[%s3 + $0xfc] sm:$0xf]
  %v347 = vld [vmem:[%s4] sm:$0x1]
  %v349 = vperm.slane %v347, 0
  %v415 = vunpack.c.l.b16 %v283
  %v416 = vunpack.c.l.b16 %v284
  %v417 = vunpack.c.l.b16 %v285
  %v418 = vunpack.c.l.b16 %v286
  %v419 = vunpack.c.l.b16 %v287
  %v420 = vunpack.c.l.b16 %v288
  %v421 = vunpack.c.l.b16 %v289
  %v422 = vunpack.c.l.b16 %v290
  %v423 = vunpack.c.l.b16 %v291
  %v424 = vunpack.c.l.b16 %v292
  %v425 = vunpack.c.l.b16 %v293
  %v426 = vunpack.c.l.b16 %v294
  %v427 = vunpack.c.l.b16 %v295
  %v428 = vunpack.c.l.b16 %v296
  %v429 = vunpack.c.l.b16 %v297
  %v430 = vunpack.c.l.b16 %v298
  %v431 = vunpack.c.l.b16 %v299
  %v432 = vunpack.c.l.b16 %v300
  %v433 = vunpack.c.l.b16 %v301
  %v434 = vunpack.c.l.b16 %v302
  %v435 = vunpack.c.l.b16 %v303
  %v436 = vunpack.c.l.b16 %v304
  %v437 = vunpack.c.l.b16 %v305
  %v438 = vunpack.c.l.b16 %v306
  %v439 = vunpack.c.l.b16 %v307
  %v440 = vunpack.c.l.b16 %v308
  %v441 = vunpack.c.l.b16 %v309
  %v442 = vunpack.c.l.b16 %v310
  %v443 = vunpack.c.l.b16 %v311
  %v444 = vunpack.c.l.b16 %v312
  %v445 = vunpack.c.l.b16 %v313
  %v446 = vunpack.c.l.b16 %v314
  %v447 = vunpack.c.l.b16 %v315
  %v448 = vunpack.c.l.b16 %v316
  %v449 = vunpack.c.l.b16 %v317
  %v450 = vunpack.c.l.b16 %v318
  %v451 = vunpack.c.l.b16 %v319
  %v452 = vunpack.c.l.b16 %v320
  %v453 = vunpack.c.l.b16 %v321
  %v454 = vunpack.c.l.b16 %v322
  %v455 = vunpack.c.l.b16 %v323
  %v456 = vunpack.c.l.b16 %v324
  %v457 = vunpack.c.l.b16 %v325
  %v458 = vunpack.c.l.b16 %v326
  %v459 = vunpack.c.l.b16 %v327
  %v460 = vunpack.c.l.b16 %v328
  %v461 = vunpack.c.l.b16 %v329
  %v462 = vunpack.c.l.b16 %v330
  %v463 = vunpack.c.l.b16 %v331
  %v464 = vunpack.c.l.b16 %v332
  %v465 = vunpack.c.l.b16 %v333
  %v466 = vunpack.c.l.b16 %v334
  %v467 = vunpack.c.l.b16 %v335
  %v468 = vunpack.c.l.b16 %v336
  %v469 = vunpack.c.l.b16 %v337
  %v470 = vunpack.c.l.b16 %v338
  %v471 = vunpack.c.l.b16 %v339
  %v472 = vunpack.c.l.b16 %v340
  %v473 = vunpack.c.l.b16 %v341
  %v474 = vunpack.c.l.b16 %v342
  %v475 = vunpack.c.l.b16 %v343
  %v476 = vunpack.c.l.b16 %v344
  %v477 = vunpack.c.l.b16 %v345
  %v478 = vunpack.c.l.b16 %v346
  %v479 = vpack.c.b16 %v416, %v415
  %v480 = vpack.c.b16 %v418, %v417
  %v481 = vpack.c.b16 %v420, %v419
  %v482 = vpack.c.b16 %v422, %v421
  %v483 = vpack.c.b16 %v424, %v423
  %v484 = vpack.c.b16 %v426, %v425
  %v485 = vpack.c.b16 %v428, %v427
  %v486 = vpack.c.b16 %v430, %v429
  %v487 = vpack.c.b16 %v432, %v431
  %v488 = vpack.c.b16 %v434, %v433
  %v489 = vpack.c.b16 %v436, %v435
  %v490 = vpack.c.b16 %v438, %v437
  %v491 = vpack.c.b16 %v440, %v439
  %v492 = vpack.c.b16 %v442, %v441
  %v493 = vpack.c.b16 %v444, %v443
  %v494 = vpack.c.b16 %v446, %v445
  %v495 = vpack.c.b16 %v448, %v447
  %v496 = vpack.c.b16 %v450, %v449
  %v497 = vpack.c.b16 %v452, %v451
  %v498 = vpack.c.b16 %v454, %v453
  %v499 = vpack.c.b16 %v456, %v455
  %v500 = vpack.c.b16 %v458, %v457
  %v501 = vpack.c.b16 %v460, %v459
  %v502 = vpack.c.b16 %v462, %v461
  %v503 = vpack.c.b16 %v464, %v463
  %v504 = vpack.c.b16 %v466, %v465
  %v505 = vpack.c.b16 %v468, %v467
  %v506 = vpack.c.b16 %v470, %v469
  %v507 = vpack.c.b16 %v472, %v471
  %v508 = vpack.c.b16 %v474, %v473
  %v509 = vpack.c.b16 %v476, %v475
  %v510 = vpack.c.b16 %v478, %v477
  %543 = vmatpush.bf16.msra.mxu0 %v486
  %544 = vmatpush.bf16.msra.mxu0 %v485
  %545 = vmatpush.bf16.msra.mxu0 %v484
  %546 = vmatpush.bf16.msra.mxu0 %v483
  %547 = vmatpush.bf16.msra.mxu0 %v482
  %548 = vmatpush.bf16.msra.mxu0 %v481
  %549 = vmatpush.bf16.msra.mxu0 %v480
  %550 = vmatpush.bf16.msra.mxu0 %v479
  %551 = vmatmul.bf16.gmra.mxu0 %v279
  %v552 = vpop.f32.mrf.mxu0
  %v553 = vadd.f32 %v349, %v552
  %v554 = vpop.f32.mrf.mxu0
  %555 = vdwg.mxu0
  %556 = vmatpush.bf16.msra.mxu0 %v494
  %557 = vmatpush.bf16.msra.mxu0 %v493
  %558 = vmatpush.bf16.msra.mxu0 %v492
  %559 = vmatpush.bf16.msra.mxu0 %v491
  %560 = vmatpush.bf16.msra.mxu0 %v490
  %561 = vmatpush.bf16.msra.mxu0 %v489
  %562 = vmatpush.bf16.msra.mxu0 %v488
  %563 = vmatpush.bf16.msra.mxu0 %v487
  %564 = vmatmul.bf16.gmra.mxu0 %v280
  %v565 = vpop.f32.mrf.mxu0
  %v566 = vadd.f32 %v553, %v565
  %v567 = vpop.f32.mrf.mxu0
  %568 = vdwg.mxu0
  %569 = vmatpush.bf16.msra.mxu0 %v502
  %570 = vmatpush.bf16.msra.mxu0 %v501
  %571 = vmatpush.bf16.msra.mxu0 %v500
  %572 = vmatpush.bf16.msra.mxu0 %v499
  %573 = vmatpush.bf16.msra.mxu0 %v498
  %574 = vmatpush.bf16.msra.mxu0 %v497
  %575 = vmatpush.bf16.msra.mxu0 %v496
  %576 = vmatpush.bf16.msra.mxu0 %v495
  %577 = vmatmul.bf16.gmra.mxu0 %v281
  %v578 = vpop.f32.mrf.mxu0
  %v579 = vadd.f32 %v566, %v578
  %v580 = vpop.f32.mrf.mxu0
  %581 = vdwg.mxu0
  %582 = vmatpush.bf16.msra.mxu0 %v510
  %583 = vmatpush.bf16.msra.mxu0 %v509
  %584 = vmatpush.bf16.msra.mxu0 %v508
  %585 = vmatpush.bf16.msra.mxu0 %v507
  %586 = vmatpush.bf16.msra.mxu0 %v506
  %587 = vmatpush.bf16.msra.mxu0 %v505
  %588 = vmatpush.bf16.msra.mxu0 %v504
  %589 = vmatpush.bf16.msra.mxu0 %v503
  %590 = vmatmul.bf16.gmra.mxu0 %v282
  %v591 = vpop.f32.mrf.mxu0
  %v592 = vadd.f32 %v579, %v591
  %v593 = vpop.f32.mrf.mxu0
  %594 = vdwg.mxu0
  %595 = vst [vmem:[%s5] sm:$0xff] %v592
  // Predicated region
  $region22: #{agent_nn_forward.7} parent=0 // pred_check
    _
  $region23: #{agent_nn_forward.7} parent=0 // pred_check_branch
    %597 = sbr.rel (0) target = $region25
  $region24: #{agent_nn_forward.7} parent=0 // pred_region
    _
  $region25: #{agent_nn_forward.7} parent=0 // pred_fallthru
    _
  // Predicated region
  $region26: #{agent_nn_forward.7} parent=0 // pred_check
    _
  $region27: #{agent_nn_forward.7} parent=0 // pred_check_branch
    %599 = sbr.rel (0) target = $region29
  $region28: #{agent_nn_forward.7} parent=0 // pred_region
    _
  $region29: #{agent_nn_forward.7} parent=0 // pred_fallthru
    _

</llo_original>
